<compile_context>
chip_gen: v6e
topology: v6e:2x2x1
jax: 0.10.0
libtpu: 0.0.40
codegen_flags: <defaults>
</compile_context>

<pallas_src>
import functools

import jax
import jax.numpy as jnp
from jax.experimental import pallas as pl
from jax.experimental.pallas import tpu as pltpu


def _round_up(v, m):
    return (v + m - 1) // m * m


_CHUNK = 32  # rows per inner step; multiple of 16 (bf16 sublane packing)


def _encoder_block_kernel(x_ref, w_ref, b_ref, gamma_ref, beta_ref, proj_ref,
                          out_ref, sum_ref, sumsq_ref, *,
                          r_tile, chunk, total_rows, n_valid, inv_count, eps,
                          use_tanh):
    # x_ref:        [1, r_tile, K]            bf16  im2col rows for this tile
    # w_ref:        [K, Cout_pad]             bf16  folded 3x3 weights
    # b/gamma/beta: [1, Cout_pad]             f32
    # proj_ref:     [Cout_pad, Cout_pad]      f32   group-membership matrix
    # out_ref:      [1, total_rows, Cout_pad] bf16  resident across the tile axis
    # sum/sumsq:    [1, Cout_pad]             f32   running per-channel stats
    t = pl.program_id(1)
    nt = pl.num_programs(1)
    cout_pad = out_ref.shape[-1]
    needs_mask = n_valid != total_rows       # static

    @pl.when(t == 0)
    def _init():
        sum_ref[...] = jnp.zeros_like(sum_ref)
        sumsq_ref[...] = jnp.zeros_like(sumsq_ref)

    row0 = t * r_tile
    w_mat = w_ref[...]                       # loop-invariant, hoisted
    bias = b_ref[...]
    n_chunks = r_tile // chunk

    def conv_chunk(c, carry):
        s_a, q_a = carry
        loc = pl.multiple_of(c * chunk, chunk)
        a = x_ref[0, pl.ds(loc, chunk), :]                       # [chunk, K] bf16
        y = jnp.dot(a, w_mat, preferred_element_type=jnp.float32) + bias
        dst = pl.multiple_of(row0 + c * chunk, chunk)
        out_ref[0, pl.ds(dst, chunk), :] = y.astype(out_ref.dtype)
        if needs_mask:
            ridx = row0 + c * chunk + jax.lax.broadcasted_iota(
                jnp.int32, (chunk, 1), 0)
            y = y * (ridx < n_valid).astype(jnp.float32)
        # Stats via XLU sublane reductions (keeps the MXU path free).
        s_a = s_a + jnp.sum(y, axis=0, keepdims=True)
        q_a = q_a + jnp.sum(y * y, axis=0, keepdims=True)
        return s_a, q_a

    zeros = jnp.zeros((1, cout_pad), jnp.float32)
    s_acc, q_acc = jax.lax.fori_loop(0, n_chunks, conv_chunk, (zeros, zeros),
                                     unroll=n_chunks <= 8)
    sum_ref[...] += s_acc
    sumsq_ref[...] += q_acc

    @pl.when(t == nt - 1)
    def _finalize():
        # Per-group statistics via one tiny [1,C]x[C,C] dot (group membership).
        mean_c = jnp.dot(sum_ref[...], proj_ref[...],
                         preferred_element_type=jnp.float32) * inv_count
        meansq_c = jnp.dot(sumsq_ref[...], proj_ref[...],
                           preferred_element_type=jnp.float32) * inv_count
        var_c = jnp.maximum(meansq_c - mean_c * mean_c, 0.0)   # clamp cancellation
        scale = jax.lax.rsqrt(var_c + eps) * gamma_ref[...]
        shift = beta_ref[...] - mean_c * scale

        def norm_chunk(i, carry):
            rs = pl.multiple_of(i * chunk, chunk)
            z = out_ref[0, pl.ds(rs, chunk), :].astype(jnp.float32)
            z = z * scale + shift
            if use_tanh:
                z = jnp.tanh(z)
            else:
                # Mish(z) = z * tanh(softplus(z)); single exp + approx recip:
                #   u = exp(-|z|)
                #   tanh(softplus(z)) = (1+2u)/(1+2u+2u^2)   for z >= 0
                #                     = u(u+2)/(u(u+2)+2)    for z <  0
                u = jnp.exp(-jnp.abs(z))
                num = jnp.where(z >= 0, 1.0 + 2.0 * u, u * (u + 2.0))
                den = num + jnp.where(z >= 0, 2.0 * u * u, 2.0)
                z = z * num * pl.reciprocal(den, approx=True)
            out_ref[0, pl.ds(rs, chunk), :] = z.astype(out_ref.dtype)
            return carry

        total_chunks = total_rows // chunk
        jax.lax.fori_loop(0, total_chunks, norm_chunk, 0,
                          unroll=total_chunks <= 8)


def encoder_block_forward(x, w, b, gamma, beta, *, num_groups, size=None,
                          lastblock=False, r_tile=None):
    """x: [N, Cin, H, W] f32.  w: [Cout, Cin, 3, 3], b/gamma/beta: [Cout]."""
    N, Cin, H, W = x.shape
    Cout = w.shape[0]
    assert Cout % num_groups == 0
    cpg = Cout // num_groups
    K = 9 * Cin
    cout_pad = _round_up(Cout, 128)
    R = H * W

    chunk = _CHUNK
    if r_tile is None:
        r_tile = min(_round_up(R, chunk), 512)
    r_tile = _round_up(r_tile, chunk)
    nt = pl.cdiv(R, r_tile)
    R_pad = nt * r_tile                       # multiple of chunk -> aligned tiles

    # ---- glue: channels-last im2col (K folded), bf16 -------------------------
    xh = jnp.transpose(x, (0, 2, 3, 1)).astype(jnp.bfloat16)      # [N,H,W,Cin]
    xp = jnp.pad(xh, ((0, 0), (1, 1), (1, 1), (0, 0)))            # [N,H+2,W+2,Cin]
    cols = [xp[:, kh:kh + H, kw:kw + W, :] for kh in range(3) for kw in range(3)]
    xcol = jnp.concatenate(cols, axis=-1).reshape(N, R, K)        # [N,H*W,9*Cin]
    if R_pad != R:
        xcol = jnp.pad(xcol, ((0, 0), (0, R_pad - R), (0, 0)))

    # ---- glue: parameters (lane-dense: channels padded to cout_pad) ----------
    cpad = cout_pad - Cout
    w_col = jnp.transpose(w, (2, 3, 1, 0)).reshape(K, Cout)       # [(kh,kw,ci),co]
    w_col = jnp.pad(w_col, ((0, 0), (0, cpad))).astype(jnp.bfloat16)
    b_row = jnp.pad(b.astype(jnp.float32), (0, cpad)).reshape(1, cout_pad)
    gamma_row = jnp.pad(gamma.astype(jnp.float32), (0, cpad)).reshape(1, cout_pad)
    beta_row = jnp.pad(beta.astype(jnp.float32), (0, cpad)).reshape(1, cout_pad)
    gid = jnp.arange(Cout) // cpg
    proj = (gid[:, None] == gid[None, :]).astype(jnp.float32)     # [Cout, Cout]
    proj = jnp.pad(proj, ((0, cpad), (0, cpad)))                  # pad chans -> no group

    kernel = functools.partial(
        _encoder_block_kernel, r_tile=r_tile, chunk=chunk, total_rows=R_pad,
        n_valid=R, inv_count=1.0 / float(R * cpg), eps=1e-5, use_tanh=lastblock)

    # ---- VMEM limit: generation-aware (v5e/v6e 128 MiB, v7x 64 MiB) ----------
    est = 0
    est += 2 * _round_up(r_tile, 16) * _round_up(K, 128) * 2       # x tile bf16 (dbuf)
    est += 2 * _round_up(K, 16) * cout_pad * 2                     # weights
    est += 2 * _round_up(R_pad, 16) * cout_pad * 2                 # resident out (bf16)
    est += cout_pad * cout_pad * 4 + 16 * cout_pad * 4             # proj + rows + stats
    est += 8 * chunk * cout_pad * 4                                # chunk temporaries
    try:
        cap = int(pltpu.get_tpu_info().vmem_capacity_bytes)
    except Exception:
        cap = 64 << 20
    vmem_limit = int(min(max(2 * est, 16 << 20), int(cap * 0.85)))

    out = pl.pallas_call(
        kernel,
        out_shape=jax.ShapeDtypeStruct((N, R_pad, cout_pad), jnp.bfloat16),
        grid=(N, nt),
        in_specs=[
            pl.BlockSpec((1, r_tile, K), lambda n, t: (n, t, 0)),
            pl.BlockSpec((K, cout_pad), lambda n, t: (0, 0)),
            pl.BlockSpec((1, cout_pad), lambda n, t: (0, 0)),
            pl.BlockSpec((1, cout_pad), lambda n, t: (0, 0)),
            pl.BlockSpec((1, cout_pad), lambda n, t: (0, 0)),
            pl.BlockSpec((cout_pad, cout_pad), lambda n, t: (0, 0)),
        ],
        out_specs=pl.BlockSpec((1, R_pad, cout_pad), lambda n, t: (n, 0, 0)),
        scratch_shapes=[pltpu.VMEM((1, cout_pad), jnp.float32),
                        pltpu.VMEM((1, cout_pad), jnp.float32)],
        compiler_params=pltpu.CompilerParams(
            dimension_semantics=("parallel", "arbitrary"),
            vmem_limit_bytes=vmem_limit),
    )(xcol, w_col, b_row, gamma_row, beta_row, proj)

    # ---- glue: crop pad rows/channels, optional nearest resize ---------------
    out = out[:, :R, :Cout].reshape(N, H, W, Cout)                # bf16 NHWC
    if size is not None:
        out_h, out_w = size
        hi = (jnp.arange(out_h) * H // out_h).astype(jnp.int32)   # nearest (torch default)
        wi = (jnp.arange(out_w) * W // out_w).astype(jnp.int32)
        out = out[:, hi][:, :, wi]
    # TODO(synk): when chaining EncoderBlocks keep the bf16 NHWC kernel layout
    # end-to-end (and fold the resize into the finalize stores); the crop /
    # transpose / f32 cast below exist only to match the module's NCHW f32 API.
    return jnp.transpose(out, (0, 3, 1, 2)).astype(jnp.float32)


def _reference_forward(x, w, b, gamma, beta, *, num_groups, size=None,
                       lastblock=False):
    """Pure-JAX f32 reference matching the PyTorch module."""
    N, Cin, H, W = x.shape
    Cout = w.shape[0]
    y = jax.lax.conv_general_dilated(
        x, w, window_strides=(1, 1), padding=((1, 1), (1, 1)),
        dimension_numbers=("NCHW", "OIHW", "NCHW"))
    y = y + b.reshape(1, Cout, 1, 1)
    yg = y.reshape(N, num_groups, Cout // num_groups, H, W)
    mean = yg.mean(axis=(2, 3, 4), keepdims=True)
    var = yg.var(axis=(2, 3, 4), keepdims=True)
    yg = (yg - mean) * jax.lax.rsqrt(var + 1e-5)
    y = yg.reshape(N, Cout, H, W) * gamma.reshape(1, Cout, 1, 1) \
        + beta.reshape(1, Cout, 1, 1)
    if lastblock:
        y = jnp.tanh(y)
    else:
        y = y * jnp.tanh(jax.nn.softplus(y))
    if size is not None:
        out_h, out_w = size
        hi = (jnp.arange(out_h) * H // out_h).astype(jnp.int32)
        wi = (jnp.arange(out_w) * W // out_w).astype(jnp.int32)
        y = y[:, :, hi, :][:, :, :, wi]
    return y


if __name__ == "__main__":
    key = jax.random.PRNGKey(0)

    def _make(N, Cin, Cout, H, W, k):
        kx, kw, kb, kg, kbt = jax.random.split(k, 5)
        x = jax.random.normal(kx, (N, Cin, H, W), dtype=jnp.float32)
        w = jax.random.normal(kw, (Cout, Cin, 3, 3), dtype=jnp.float32) * 0.1
        b = jax.random.normal(kb, (Cout,), dtype=jnp.float32) * 0.1
        gamma = 1.0 + 0.1 * jax.random.normal(kg, (Cout,), dtype=jnp.float32)
        beta = 0.1 * jax.random.normal(kbt, (Cout,), dtype=jnp.float32)
        return x, w, b, gamma, beta

    # Tolerance covers bf16 conv inputs/weights, bf16 pre-norm residency, and
    # the EUP approximate reciprocal inside Mish (reference is fully f32).
    tol = dict(rtol=3e-2, atol=3e-2)
    k1, k2 = jax.random.split(key)

    # Config 1: Mish, no upsample, 2 row tiles per sample (multi-tile stats).
    x, w, b, g, bt = _make(2, 4, 8, 16, 16, k1)
    out1 = jax.block_until_ready(
        encoder_block_forward(x, w, b, g, bt, num_groups=2, r_tile=128))
    ref1 = _reference_forward(x, w, b, g, bt, num_groups=2)
    assert out1.shape == ref1.shape, (out1.shape, ref1.shape)
    assert jnp.allclose(out1, ref1, **tol), float(jnp.max(jnp.abs(out1 - ref1)))

    # Config 2: lastblock (tanh) + nearest resize to (8, 8), single tile.
    out2 = jax.block_until_ready(
        encoder_block_forward(x, w, b, g, bt, num_groups=4, size=(8, 8),
                              lastblock=True))
    ref2 = _reference_forward(x, w, b, g, bt, num_groups=4, size=(8, 8),
                              lastblock=True)
    assert out2.shape == ref2.shape, (out2.shape, ref2.shape)
    assert jnp.allclose(out2, ref2, **tol), float(jnp.max(jnp.abs(out2 - ref2)))

    # Config 3: odd spatial size (exercises padded-row masking) + multi-tile.
    x3, w3, b3, g3, bt3 = _make(2, 3, 16, 10, 10, k2)
    out3 = jax.block_until_ready(
        encoder_block_forward(x3, w3, b3, g3, bt3, num_groups=4, r_tile=64))
    ref3 = _reference_forward(x3, w3, b3, g3, bt3, num_groups=4)
    assert out3.shape == ref3.shape, (out3.shape, ref3.shape)
    assert jnp.allclose(out3, ref3, **tol), float(jnp.max(jnp.abs(out3 - ref3)))

    print("KERNEL_OK")
</pallas_src>

<mosaic_0001>
module attributes {stable_mosaic.version = 11 : i64} {
  func.func @_encoder_block_kernel(%arg0: i32, %arg1: i32, %arg2: memref<1x128x36xbf16, #tpu.memory_space<vmem>>, %arg3: memref<36x128xbf16, #tpu.memory_space<vmem>>, %arg4: memref<1x128xf32, #tpu.memory_space<vmem>>, %arg5: memref<1x128xf32, #tpu.memory_space<vmem>>, %arg6: memref<1x128xf32, #tpu.memory_space<vmem>>, %arg7: memref<128x128xf32, #tpu.memory_space<vmem>>, %arg8: memref<1x256x128xbf16, #tpu.memory_space<vmem>>, %arg9: memref<1x128xf32, #tpu.memory_space<vmem>>, %arg10: memref<1x128xf32, #tpu.memory_space<vmem>>) attributes {dimension_semantics = [#tpu.dimension_semantics<parallel>, #tpu.dimension_semantics<arbitrary>], iteration_bounds = array<i64: 2, 2>, scalar_prefetch = 0 : i64, scratch_operands = 2 : i64, tpu.core_type = #tpu.core_type<tc>, window_params = [{transform_indices = @transform_0, window_bounds = array<i64: 1, 128, 36>}, {pipeline_mode = #tpu.pipeline_mode<synchronous>, transform_indices = @transform_1, window_bounds = array<i64: 36, 128>}, {pipeline_mode = #tpu.pipeline_mode<synchronous>, transform_indices = @transform_2, window_bounds = array<i64: 1, 128>}, {pipeline_mode = #tpu.pipeline_mode<synchronous>, transform_indices = @transform_3, window_bounds = array<i64: 1, 128>}, {pipeline_mode = #tpu.pipeline_mode<synchronous>, transform_indices = @transform_4, window_bounds = array<i64: 1, 128>}, {pipeline_mode = #tpu.pipeline_mode<synchronous>, transform_indices = @transform_5, window_bounds = array<i64: 128, 128>}, {transform_indices = @transform_6, window_bounds = array<i64: 1, 256, 128>}]} {
    %c0_i32 = arith.constant 0 : i32
    %0 = arith.cmpi eq, %arg1, %c0_i32 : i32
    %1 = arith.extui %0 : i1 to i32
    %c0_i32_0 = arith.constant 0 : i32
    %2 = arith.cmpi ne, %1, %c0_i32_0 : i32
    scf.if %2 {
      %cst_50 = arith.constant 0.000000e+00 : f32
      %108 = vector.broadcast %cst_50 : f32 to vector<1x128xf32>
      %c0_51 = arith.constant 0 : index
      %c0_52 = arith.constant 0 : index
      %109 = vector.load %arg9[%c0_51, %c0_52] : memref<1x128xf32, #tpu.memory_space<vmem>>, vector<1x128xf32>
      tpu.vector_store %arg9[%c0_51, %c0_52], %108 {strides = array<i32>} : memref<1x128xf32, #tpu.memory_space<vmem>>, vector<1x128xf32>,
      %cst_53 = arith.constant 0.000000e+00 : f32
      %110 = vector.broadcast %cst_53 : f32 to vector<1x128xf32>
      %c0_54 = arith.constant 0 : index
      %c0_55 = arith.constant 0 : index
      %111 = vector.load %arg10[%c0_54, %c0_55] : memref<1x128xf32, #tpu.memory_space<vmem>>, vector<1x128xf32>
      tpu.vector_store %arg10[%c0_54, %c0_55], %110 {strides = array<i32>} : memref<1x128xf32, #tpu.memory_space<vmem>>, vector<1x128xf32>,
    } else {
    }
    %c128_i32 = arith.constant 128 : i32
    %3 = arith.muli %arg1, %c128_i32 : i32
    %c0 = arith.constant 0 : index
    %c0_1 = arith.constant 0 : index
    %4 = vector.load %arg3[%c0, %c0_1] : memref<36x128xbf16, #tpu.memory_space<vmem>>, vector<36x128xbf16>
    %c0_2 = arith.constant 0 : index
    %c0_3 = arith.constant 0 : index
    %5 = vector.load %arg4[%c0_2, %c0_3] : memref<1x128xf32, #tpu.memory_space<vmem>>, vector<1x128xf32>
    %cst = arith.constant 0.000000e+00 : f32
    %6 = vector.broadcast %cst : f32 to vector<1x128xf32>
    %c0_i32_4 = arith.constant 0 : i32
    %c32_i32 = arith.constant 32 : i32
    %7 = arith.muli %c0_i32_4, %c32_i32 : i32
    %8 = tpu.assume_multiple %7, 32 : i32
    %c0_5 = arith.constant 0 : index
    %9 = arith.index_cast %8 : i32 to index
    %c0_6 = arith.constant 0 : index
    %10 = vector.load %arg2[%c0_5, %9, %c0_6] : memref<1x128x36xbf16, #tpu.memory_space<vmem>>, vector<1x32x36xbf16>
    %11 = vector.shape_cast %10 : vector<1x32x36xbf16> to vector<32x36xbf16>
    %cst_7 = arith.constant dense<0.000000e+00> : vector<32x128xf32>
    %12 = tpu.matmul %11, %4, %cst_7 {dimension_numbers = #tpu.dot_dimension_numbers<[1], [0], [0], [1], [0, 0, 1, 1], [], []>} : vector<32x36xbf16>, vector<36x128xbf16>, vector<32x128xf32> -> vector<32x128xf32>
    %13 = vector.broadcast %5 : vector<1x128xf32> to vector<32x128xf32>
    %14 = arith.addf %12, %13 : vector<32x128xf32>
    %c32_i32_8 = arith.constant 32 : i32
    %15 = arith.muli %c0_i32_4, %c32_i32_8 : i32
    %16 = arith.addi %3, %15 : i32
    %17 = tpu.assume_multiple %16, 32 : i32
    %18 = arith.truncf %14 : vector<32x128xf32> to vector<32x128xbf16>
    %c0_9 = arith.constant 0 : index
    %19 = arith.index_cast %17 : i32 to index
    %c0_10 = arith.constant 0 : index
    %20 = vector.load %arg8[%c0_9, %19, %c0_10] : memref<1x256x128xbf16, #tpu.memory_space<vmem>>, vector<1x32x128xbf16>
    %21 = vector.shape_cast %20 : vector<1x32x128xbf16> to vector<32x128xbf16>
    %22 = vector.shape_cast %18 : vector<32x128xbf16> to vector<1x32x128xbf16>
    tpu.vector_store %arg8[%c0_9, %19, %c0_10], %22 {strides = array<i32>} : memref<1x256x128xbf16, #tpu.memory_space<vmem>>, vector<1x32x128xbf16>,
    %cst_11 = arith.constant dense<0.000000e+00> : vector<128xf32>
    %23 = vector.multi_reduction <add>, %14, %cst_11 [0] : vector<32x128xf32> to vector<128xf32>
    %24 = vector.shape_cast %23 : vector<128xf32> to vector<1x128xf32>
    %25 = arith.addf %6, %24 : vector<1x128xf32>
    %26 = arith.mulf %14, %14 : vector<32x128xf32>
    %cst_12 = arith.constant dense<0.000000e+00> : vector<128xf32>
    %27 = vector.multi_reduction <add>, %26, %cst_12 [0] : vector<32x128xf32> to vector<128xf32>
    %28 = vector.shape_cast %27 : vector<128xf32> to vector<1x128xf32>
    %29 = arith.addf %6, %28 : vector<1x128xf32>
    %c1_i32 = arith.constant 1 : i32
    %c32_i32_13 = arith.constant 32 : i32
    %30 = arith.muli %c1_i32, %c32_i32_13 : i32
    %31 = tpu.assume_multiple %30, 32 : i32
    %c0_14 = arith.constant 0 : index
    %32 = arith.index_cast %31 : i32 to index
    %c0_15 = arith.constant 0 : index
    %33 = vector.load %arg2[%c0_14, %32, %c0_15] : memref<1x128x36xbf16, #tpu.memory_space<vmem>>, vector<1x32x36xbf16>
    %34 = vector.shape_cast %33 : vector<1x32x36xbf16> to vector<32x36xbf16>
    %cst_16 = arith.constant dense<0.000000e+00> : vector<32x128xf32>
    %35 = tpu.matmul %34, %4, %cst_16 {dimension_numbers = #tpu.dot_dimension_numbers<[1], [0], [0], [1], [0, 0, 1, 1], [], []>} : vector<32x36xbf16>, vector<36x128xbf16>, vector<32x128xf32> -> vector<32x128xf32>
    %36 = vector.broadcast %5 : vector<1x128xf32> to vector<32x128xf32>
    %37 = arith.addf %35, %36 : vector<32x128xf32>
    %c32_i32_17 = arith.constant 32 : i32
    %38 = arith.muli %c1_i32, %c32_i32_17 : i32
    %39 = arith.addi %3, %38 : i32
    %40 = tpu.assume_multiple %39, 32 : i32
    %41 = arith.truncf %37 : vector<32x128xf32> to vector<32x128xbf16>
    %c0_18 = arith.constant 0 : index
    %42 = arith.index_cast %40 : i32 to index
    %c0_19 = arith.constant 0 : index
    %43 = vector.load %arg8[%c0_18, %42, %c0_19] : memref<1x256x128xbf16, #tpu.memory_space<vmem>>, vector<1x32x128xbf16>
    %44 = vector.shape_cast %43 : vector<1x32x128xbf16> to vector<32x128xbf16>
    %45 = vector.shape_cast %41 : vector<32x128xbf16> to vector<1x32x128xbf16>
    tpu.vector_store %arg8[%c0_18, %42, %c0_19], %45 {strides = array<i32>} : memref<1x256x128xbf16, #tpu.memory_space<vmem>>, vector<1x32x128xbf16>,
    %cst_20 = arith.constant dense<0.000000e+00> : vector<128xf32>
    %46 = vector.multi_reduction <add>, %37, %cst_20 [0] : vector<32x128xf32> to vector<128xf32>
    %47 = vector.shape_cast %46 : vector<128xf32> to vector<1x128xf32>
    %48 = arith.addf %25, %47 : vector<1x128xf32>
    %49 = arith.mulf %37, %37 : vector<32x128xf32>
    %cst_21 = arith.constant dense<0.000000e+00> : vector<128xf32>
    %50 = vector.multi_reduction <add>, %49, %cst_21 [0] : vector<32x128xf32> to vector<128xf32>
    %51 = vector.shape_cast %50 : vector<128xf32> to vector<1x128xf32>
    %52 = arith.addf %29, %51 : vector<1x128xf32>
    %c2_i32 = arith.constant 2 : i32
    %c32_i32_22 = arith.constant 32 : i32
    %53 = arith.muli %c2_i32, %c32_i32_22 : i32
    %54 = tpu.assume_multiple %53, 32 : i32
    %c0_23 = arith.constant 0 : index
    %55 = arith.index_cast %54 : i32 to index
    %c0_24 = arith.constant 0 : index
    %56 = vector.load %arg2[%c0_23, %55, %c0_24] : memref<1x128x36xbf16, #tpu.memory_space<vmem>>, vector<1x32x36xbf16>
    %57 = vector.shape_cast %56 : vector<1x32x36xbf16> to vector<32x36xbf16>
    %cst_25 = arith.constant dense<0.000000e+00> : vector<32x128xf32>
    %58 = tpu.matmul %57, %4, %cst_25 {dimension_numbers = #tpu.dot_dimension_numbers<[1], [0], [0], [1], [0, 0, 1, 1], [], []>} : vector<32x36xbf16>, vector<36x128xbf16>, vector<32x128xf32> -> vector<32x128xf32>
    %59 = vector.broadcast %5 : vector<1x128xf32> to vector<32x128xf32>
    %60 = arith.addf %58, %59 : vector<32x128xf32>
    %c32_i32_26 = arith.constant 32 : i32
    %61 = arith.muli %c2_i32, %c32_i32_26 : i32
    %62 = arith.addi %3, %61 : i32
    %63 = tpu.assume_multiple %62, 32 : i32
    %64 = arith.truncf %60 : vector<32x128xf32> to vector<32x128xbf16>
    %c0_27 = arith.constant 0 : index
    %65 = arith.index_cast %63 : i32 to index
    %c0_28 = arith.constant 0 : index
    %66 = vector.load %arg8[%c0_27, %65, %c0_28] : memref<1x256x128xbf16, #tpu.memory_space<vmem>>, vector<1x32x128xbf16>
    %67 = vector.shape_cast %66 : vector<1x32x128xbf16> to vector<32x128xbf16>
    %68 = vector.shape_cast %64 : vector<32x128xbf16> to vector<1x32x128xbf16>
    tpu.vector_store %arg8[%c0_27, %65, %c0_28], %68 {strides = array<i32>} : memref<1x256x128xbf16, #tpu.memory_space<vmem>>, vector<1x32x128xbf16>,
    %cst_29 = arith.constant dense<0.000000e+00> : vector<128xf32>
    %69 = vector.multi_reduction <add>, %60, %cst_29 [0] : vector<32x128xf32> to vector<128xf32>
    %70 = vector.shape_cast %69 : vector<128xf32> to vector<1x128xf32>
    %71 = arith.addf %48, %70 : vector<1x128xf32>
    %72 = arith.mulf %60, %60 : vector<32x128xf32>
    %cst_30 = arith.constant dense<0.000000e+00> : vector<128xf32>
    %73 = vector.multi_reduction <add>, %72, %cst_30 [0] : vector<32x128xf32> to vector<128xf32>
    %74 = vector.shape_cast %73 : vector<128xf32> to vector<1x128xf32>
    %75 = arith.addf %52, %74 : vector<1x128xf32>
    %c3_i32 = arith.constant 3 : i32
    %c32_i32_31 = arith.constant 32 : i32
    %76 = arith.muli %c3_i32, %c32_i32_31 : i32
    %77 = tpu.assume_multiple %76, 32 : i32
    %c0_32 = arith.constant 0 : index
    %78 = arith.index_cast %77 : i32 to index
    %c0_33 = arith.constant 0 : index
    %79 = vector.load %arg2[%c0_32, %78, %c0_33] : memref<1x128x36xbf16, #tpu.memory_space<vmem>>, vector<1x32x36xbf16>
    %80 = vector.shape_cast %79 : vector<1x32x36xbf16> to vector<32x36xbf16>
    %cst_34 = arith.constant dense<0.000000e+00> : vector<32x128xf32>
    %81 = tpu.matmul %80, %4, %cst_34 {dimension_numbers = #tpu.dot_dimension_numbers<[1], [0], [0], [1], [0, 0, 1, 1], [], []>} : vector<32x36xbf16>, vector<36x128xbf16>, vector<32x128xf32> -> vector<32x128xf32>
    %82 = vector.broadcast %5 : vector<1x128xf32> to vector<32x128xf32>
    %83 = arith.addf %81, %82 : vector<32x128xf32>
    %c32_i32_35 = arith.constant 32 : i32
    %84 = arith.muli %c3_i32, %c32_i32_35 : i32
    %85 = arith.addi %3, %84 : i32
    %86 = tpu.assume_multiple %85, 32 : i32
    %87 = arith.truncf %83 : vector<32x128xf32> to vector<32x128xbf16>
    %c0_36 = arith.constant 0 : index
    %88 = arith.index_cast %86 : i32 to index
    %c0_37 = arith.constant 0 : index
    %89 = vector.load %arg8[%c0_36, %88, %c0_37] : memref<1x256x128xbf16, #tpu.memory_space<vmem>>, vector<1x32x128xbf16>
    %90 = vector.shape_cast %89 : vector<1x32x128xbf16> to vector<32x128xbf16>
    %91 = vector.shape_cast %87 : vector<32x128xbf16> to vector<1x32x128xbf16>
    tpu.vector_store %arg8[%c0_36, %88, %c0_37], %91 {strides = array<i32>} : memref<1x256x128xbf16, #tpu.memory_space<vmem>>, vector<1x32x128xbf16>,
    %cst_38 = arith.constant dense<0.000000e+00> : vector<128xf32>
    %92 = vector.multi_reduction <add>, %83, %cst_38 [0] : vector<32x128xf32> to vector<128xf32>
    %93 = vector.shape_cast %92 : vector<128xf32> to vector<1x128xf32>
    %94 = arith.addf %71, %93 : vector<1x128xf32>
    %95 = arith.mulf %83, %83 : vector<32x128xf32>
    %cst_39 = arith.constant dense<0.000000e+00> : vector<128xf32>
    %96 = vector.multi_reduction <add>, %95, %cst_39 [0] : vector<32x128xf32> to vector<128xf32>
    %97 = vector.shape_cast %96 : vector<128xf32> to vector<1x128xf32>
    %98 = arith.addf %75, %97 : vector<1x128xf32>
    %c4_i32 = arith.constant 4 : i32
    %c0_40 = arith.constant 0 : index
    %c0_41 = arith.constant 0 : index
    %99 = vector.load %arg9[%c0_40, %c0_41] : memref<1x128xf32, #tpu.memory_space<vmem>>, vector<1x128xf32>
    %100 = arith.addf %99, %94 : vector<1x128xf32>
    %c0_42 = arith.constant 0 : index
    %c0_43 = arith.constant 0 : index
    %101 = vector.load %arg9[%c0_42, %c0_43] : memref<1x128xf32, #tpu.memory_space<vmem>>, vector<1x128xf32>
    tpu.vector_store %arg9[%c0_42, %c0_43], %100 {strides = array<i32>} : memref<1x128xf32, #tpu.memory_space<vmem>>, vector<1x128xf32>,
    %c0_44 = arith.constant 0 : index
    %c0_45 = arith.constant 0 : index
    %102 = vector.load %arg10[%c0_44, %c0_45] : memref<1x128xf32, #tpu.memory_space<vmem>>, vector<1x128xf32>
    %103 = arith.addf %102, %98 : vector<1x128xf32>
    %c0_46 = arith.constant 0 : index
    %c0_47 = arith.constant 0 : index
    %104 = vector.load %arg10[%c0_46, %c0_47] : memref<1x128xf32, #tpu.memory_space<vmem>>, vector<1x128xf32>
    tpu.vector_store %arg10[%c0_46, %c0_47], %103 {strides = array<i32>} : memref<1x128xf32, #tpu.memory_space<vmem>>, vector<1x128xf32>,
    %c1_i32_48 = arith.constant 1 : i32
    %105 = arith.cmpi eq, %arg1, %c1_i32_48 : i32
    %106 = arith.extui %105 : i1 to i32
    %c0_i32_49 = arith.constant 0 : i32
    %107 = arith.cmpi ne, %106, %c0_i32_49 : i32
    scf.if %107 {
      %c0_50 = arith.constant 0 : index
      %c0_51 = arith.constant 0 : index
      %108 = vector.load %arg9[%c0_50, %c0_51] : memref<1x128xf32, #tpu.memory_space<vmem>>, vector<1x128xf32>
      %c0_52 = arith.constant 0 : index
      %c0_53 = arith.constant 0 : index
      %109 = vector.load %arg7[%c0_52, %c0_53] : memref<128x128xf32, #tpu.memory_space<vmem>>, vector<128x128xf32>
      %cst_54 = arith.constant dense<0.000000e+00> : vector<1x128xf32>
      %110 = tpu.matmul %108, %109, %cst_54 {dimension_numbers = #tpu.dot_dimension_numbers<[1], [0], [0], [1], [0, 0, 1, 1], [], []>} : vector<1x128xf32>, vector<128x128xf32>, vector<1x128xf32> -> vector<1x128xf32>
      %cst_55 = arith.constant 9.765625E-4 : f32
      %111 = vector.broadcast %cst_55 : f32 to vector<1x128xf32>
      %112 = arith.mulf %110, %111 : vector<1x128xf32>
      %c0_56 = arith.constant 0 : index
      %c0_57 = arith.constant 0 : index
      %113 = vector.load %arg10[%c0_56, %c0_57] : memref<1x128xf32, #tpu.memory_space<vmem>>, vector<1x128xf32>
      %c0_58 = arith.constant 0 : index
      %c0_59 = arith.constant 0 : index
      %114 = vector.load %arg7[%c0_58, %c0_59] : memref<128x128xf32, #tpu.memory_space<vmem>>, vector<128x128xf32>
      %cst_60 = arith.constant dense<0.000000e+00> : vector<1x128xf32>
      %115 = tpu.matmul %113, %114, %cst_60 {dimension_numbers = #tpu.dot_dimension_numbers<[1], [0], [0], [1], [0, 0, 1, 1], [], []>} : vector<1x128xf32>, vector<128x128xf32>, vector<1x128xf32> -> vector<1x128xf32>
      %cst_61 = arith.constant 9.765625E-4 : f32
      %116 = vector.broadcast %cst_61 : f32 to vector<1x128xf32>
      %117 = arith.mulf %115, %116 : vector<1x128xf32>
      %118 = arith.mulf %112, %112 : vector<1x128xf32>
      %119 = arith.subf %117, %118 : vector<1x128xf32>
      %cst_62 = arith.constant 0.000000e+00 : f32
      %120 = vector.broadcast %cst_62 : f32 to vector<1x128xf32>
      %121 = arith.maximumf %119, %120 : vector<1x128xf32>
      %cst_63 = arith.constant 9.99999974E-6 : f32
      %122 = vector.broadcast %cst_63 : f32 to vector<1x128xf32>
      %123 = arith.addf %121, %122 : vector<1x128xf32>
      %124 = math.rsqrt %123 : vector<1x128xf32>
      %c0_64 = arith.constant 0 : index
      %c0_65 = arith.constant 0 : index
      %125 = vector.load %arg5[%c0_64, %c0_65] : memref<1x128xf32, #tpu.memory_space<vmem>>, vector<1x128xf32>
      %126 = arith.mulf %124, %125 : vector<1x128xf32>
      %c0_66 = arith.constant 0 : index
      %c0_67 = arith.constant 0 : index
      %127 = vector.load %arg6[%c0_66, %c0_67] : memref<1x128xf32, #tpu.memory_space<vmem>>, vector<1x128xf32>
      %128 = arith.mulf %112, %126 : vector<1x128xf32>
      %129 = arith.subf %127, %128 : vector<1x128xf32>
      %c0_i32_68 = arith.constant 0 : i32
      %c32_i32_69 = arith.constant 32 : i32
      %130 = arith.muli %c0_i32_68, %c32_i32_69 : i32
      %131 = tpu.assume_multiple %130, 32 : i32
      %c0_70 = arith.constant 0 : index
      %132 = arith.index_cast %131 : i32 to index
      %c0_71 = arith.constant 0 : index
      %133 = vector.load %arg8[%c0_70, %132, %c0_71] : memref<1x256x128xbf16, #tpu.memory_space<vmem>>, vector<1x32x128xbf16>
      %134 = vector.shape_cast %133 : vector<1x32x128xbf16> to vector<32x128xbf16>
      %135 = arith.extf %134 : vector<32x128xbf16> to vector<32x128xf32>
      %136 = vector.broadcast %126 : vector<1x128xf32> to vector<32x128xf32>
      %137 = arith.mulf %135, %136 : vector<32x128xf32>
      %138 = vector.broadcast %129 : vector<1x128xf32> to vector<32x128xf32>
      %139 = arith.addf %137, %138 : vector<32x128xf32>
      %140 = math.absf %139 : vector<32x128xf32>
      %cst_72 = arith.constant 0.000000e+00 : f32
      %141 = vector.broadcast %cst_72 : f32 to vector<32x128xf32>
      %142 = arith.subf %141, %140 : vector<32x128xf32>
      %143 = math.exp %142 : vector<32x128xf32>
      %cst_73 = arith.constant 0.000000e+00 : f32
      %144 = vector.broadcast %cst_73 : f32 to vector<32x128xf32>
      %145 = arith.cmpf oge, %139, %144 : vector<32x128xf32>
      %cst_74 = arith.constant 2.000000e+00 : f32
      %146 = vector.broadcast %cst_74 : f32 to vector<32x128xf32>
      %147 = arith.mulf %146, %143 : vector<32x128xf32>
      %cst_75 = arith.constant 1.000000e+00 : f32
      %148 = vector.broadcast %cst_75 : f32 to vector<32x128xf32>
      %149 = arith.addf %148, %147 : vector<32x128xf32>
      %cst_76 = arith.constant 2.000000e+00 : f32
      %150 = vector.broadcast %cst_76 : f32 to vector<32x128xf32>
      %151 = arith.addf %143, %150 : vector<32x128xf32>
      %152 = arith.mulf %143, %151 : vector<32x128xf32>
      %153 = arith.select %145, %149, %152 : vector<32x128xi1>, vector<32x128xf32>
      %cst_77 = arith.constant 0.000000e+00 : f32
      %154 = vector.broadcast %cst_77 : f32 to vector<32x128xf32>
      %155 = arith.cmpf oge, %139, %154 : vector<32x128xf32>
      %cst_78 = arith.constant 2.000000e+00 : f32
      %156 = vector.broadcast %cst_78 : f32 to vector<32x128xf32>
      %157 = arith.mulf %156, %143 : vector<32x128xf32>
      %158 = arith.mulf %157, %143 : vector<32x128xf32>
      %cst_79 = arith.constant 2.000000e+00 : f32
      %159 = vector.broadcast %cst_79 : f32 to vector<32x128xf32>
      %160 = arith.select %155, %158, %159 : vector<32x128xi1>, vector<32x128xf32>
      %161 = arith.addf %153, %160 : vector<32x128xf32>
      %162 = arith.mulf %139, %153 : vector<32x128xf32>
      %163 = tpu.reciprocal %161 {approx = true} : vector<32x128xf32> -> vector<32x128xf32>
      %164 = arith.mulf %162, %163 : vector<32x128xf32>
      %165 = arith.truncf %164 : vector<32x128xf32> to vector<32x128xbf16>
      %c0_80 = arith.constant 0 : index
      %166 = arith.index_cast %131 : i32 to index
      %c0_81 = arith.constant 0 : index
      %167 = vector.load %arg8[%c0_80, %166, %c0_81] : memref<1x256x128xbf16, #tpu.memory_space<vmem>>, vector<1x32x128xbf16>
      %168 = vector.shape_cast %167 : vector<1x32x128xbf16> to vector<32x128xbf16>
      %169 = vector.shape_cast %165 : vector<32x128xbf16> to vector<1x32x128xbf16>
      tpu.vector_store %arg8[%c0_80, %166, %c0_81], %169 {strides = array<i32>} : memref<1x256x128xbf16, #tpu.memory_space<vmem>>, vector<1x32x128xbf16>,
      %c1_i32_82 = arith.constant 1 : i32
      %c32_i32_83 = arith.constant 32 : i32
      %170 = arith.muli %c1_i32_82, %c32_i32_83 : i32
      %171 = tpu.assume_multiple %170, 32 : i32
      %c0_84 = arith.constant 0 : index
      %172 = arith.index_cast %171 : i32 to index
      %c0_85 = arith.constant 0 : index
      %173 = vector.load %arg8[%c0_84, %172, %c0_85] : memref<1x256x128xbf16, #tpu.memory_space<vmem>>, vector<1x32x128xbf16>
      %174 = vector.shape_cast %173 : vector<1x32x128xbf16> to vector<32x128xbf16>
      %175 = arith.extf %174 : vector<32x128xbf16> to vector<32x128xf32>
      %176 = vector.broadcast %126 : vector<1x128xf32> to vector<32x128xf32>
      %177 = arith.mulf %175, %176 : vector<32x128xf32>
      %178 = vector.broadcast %129 : vector<1x128xf32> to vector<32x128xf32>
      %179 = arith.addf %177, %178 : vector<32x128xf32>
      %180 = math.absf %179 : vector<32x128xf32>
      %cst_86 = arith.constant 0.000000e+00 : f32
      %181 = vector.broadcast %cst_86 : f32 to vector<32x128xf32>
      %182 = arith.subf %181, %180 : vector<32x128xf32>
      %183 = math.exp %182 : vector<32x128xf32>
      %cst_87 = arith.constant 0.000000e+00 : f32
      %184 = vector.broadcast %cst_87 : f32 to vector<32x128xf32>
      %185 = arith.cmpf oge, %179, %184 : vector<32x128xf32>
      %cst_88 = arith.constant 2.000000e+00 : f32
      %186 = vector.broadcast %cst_88 : f32 to vector<32x128xf32>
      %187 = arith.mulf %186, %183 : vector<32x128xf32>
      %cst_89 = arith.constant 1.000000e+00 : f32
      %188 = vector.broadcast %cst_89 : f32 to vector<32x128xf32>
      %189 = arith.addf %188, %187 : vector<32x128xf32>
      %cst_90 = arith.constant 2.000000e+00 : f32
      %190 = vector.broadcast %cst_90 : f32 to vector<32x128xf32>
      %191 = arith.addf %183, %190 : vector<32x128xf32>
      %192 = arith.mulf %183, %191 : vector<32x128xf32>
      %193 = arith.select %185, %189, %192 : vector<32x128xi1>, vector<32x128xf32>
      %cst_91 = arith.constant 0.000000e+00 : f32
      %194 = vector.broadcast %cst_91 : f32 to vector<32x128xf32>
      %195 = arith.cmpf oge, %179, %194 : vector<32x128xf32>
      %cst_92 = arith.constant 2.000000e+00 : f32
      %196 = vector.broadcast %cst_92 : f32 to vector<32x128xf32>
      %197 = arith.mulf %196, %183 : vector<32x128xf32>
      %198 = arith.mulf %197, %183 : vector<32x128xf32>
      %cst_93 = arith.constant 2.000000e+00 : f32
      %199 = vector.broadcast %cst_93 : f32 to vector<32x128xf32>
      %200 = arith.select %195, %198, %199 : vector<32x128xi1>, vector<32x128xf32>
      %201 = arith.addf %193, %200 : vector<32x128xf32>
      %202 = arith.mulf %179, %193 : vector<32x128xf32>
      %203 = tpu.reciprocal %201 {approx = true} : vector<32x128xf32> -> vector<32x128xf32>
      %204 = arith.mulf %202, %203 : vector<32x128xf32>
      %205 = arith.truncf %204 : vector<32x128xf32> to vector<32x128xbf16>
      %c0_94 = arith.constant 0 : index
      %206 = arith.index_cast %171 : i32 to index
      %c0_95 = arith.constant 0 : index
      %207 = vector.load %arg8[%c0_94, %206, %c0_95] : memref<1x256x128xbf16, #tpu.memory_space<vmem>>, vector<1x32x128xbf16>
      %208 = vector.shape_cast %207 : vector<1x32x128xbf16> to vector<32x128xbf16>
      %209 = vector.shape_cast %205 : vector<32x128xbf16> to vector<1x32x128xbf16>
      tpu.vector_store %arg8[%c0_94, %206, %c0_95], %209 {strides = array<i32>} : memref<1x256x128xbf16, #tpu.memory_space<vmem>>, vector<1x32x128xbf16>,
      %c2_i32_96 = arith.constant 2 : i32
      %c32_i32_97 = arith.constant 32 : i32
      %210 = arith.muli %c2_i32_96, %c32_i32_97 : i32
      %211 = tpu.assume_multiple %210, 32 : i32
      %c0_98 = arith.constant 0 : index
      %212 = arith.index_cast %211 : i32 to index
      %c0_99 = arith.constant 0 : index
      %213 = vector.load %arg8[%c0_98, %212, %c0_99] : memref<1x256x128xbf16, #tpu.memory_space<vmem>>, vector<1x32x128xbf16>
      %214 = vector.shape_cast %213 : vector<1x32x128xbf16> to vector<32x128xbf16>
      %215 = arith.extf %214 : vector<32x128xbf16> to vector<32x128xf32>
      %216 = vector.broadcast %126 : vector<1x128xf32> to vector<32x128xf32>
      %217 = arith.mulf %215, %216 : vector<32x128xf32>
      %218 = vector.broadcast %129 : vector<1x128xf32> to vector<32x128xf32>
      %219 = arith.addf %217, %218 : vector<32x128xf32>
      %220 = math.absf %219 : vector<32x128xf32>
      %cst_100 = arith.constant 0.000000e+00 : f32
      %221 = vector.broadcast %cst_100 : f32 to vector<32x128xf32>
      %222 = arith.subf %221, %220 : vector<32x128xf32>
      %223 = math.exp %222 : vector<32x128xf32>
      %cst_101 = arith.constant 0.000000e+00 : f32
      %224 = vector.broadcast %cst_101 : f32 to vector<32x128xf32>
      %225 = arith.cmpf oge, %219, %224 : vector<32x128xf32>
      %cst_102 = arith.constant 2.000000e+00 : f32
      %226 = vector.broadcast %cst_102 : f32 to vector<32x128xf32>
      %227 = arith.mulf %226, %223 : vector<32x128xf32>
      %cst_103 = arith.constant 1.000000e+00 : f32
      %228 = vector.broadcast %cst_103 : f32 to vector<32x128xf32>
      %229 = arith.addf %228, %227 : vector<32x128xf32>
      %cst_104 = arith.constant 2.000000e+00 : f32
      %230 = vector.broadcast %cst_104 : f32 to vector<32x128xf32>
      %231 = arith.addf %223, %230 : vector<32x128xf32>
      %232 = arith.mulf %223, %231 : vector<32x128xf32>
      %233 = arith.select %225, %229, %232 : vector<32x128xi1>, vector<32x128xf32>
      %cst_105 = arith.constant 0.000000e+00 : f32
      %234 = vector.broadcast %cst_105 : f32 to vector<32x128xf32>
      %235 = arith.cmpf oge, %219, %234 : vector<32x128xf32>
      %cst_106 = arith.constant 2.000000e+00 : f32
      %236 = vector.broadcast %cst_106 : f32 to vector<32x128xf32>
      %237 = arith.mulf %236, %223 : vector<32x128xf32>
      %238 = arith.mulf %237, %223 : vector<32x128xf32>
      %cst_107 = arith.constant 2.000000e+00 : f32
      %239 = vector.broadcast %cst_107 : f32 to vector<32x128xf32>
      %240 = arith.select %235, %238, %239 : vector<32x128xi1>, vector<32x128xf32>
      %241 = arith.addf %233, %240 : vector<32x128xf32>
      %242 = arith.mulf %219, %233 : vector<32x128xf32>
      %243 = tpu.reciprocal %241 {approx = true} : vector<32x128xf32> -> vector<32x128xf32>
      %244 = arith.mulf %242, %243 : vector<32x128xf32>
      %245 = arith.truncf %244 : vector<32x128xf32> to vector<32x128xbf16>
      %c0_108 = arith.constant 0 : index
      %246 = arith.index_cast %211 : i32 to index
      %c0_109 = arith.constant 0 : index
      %247 = vector.load %arg8[%c0_108, %246, %c0_109] : memref<1x256x128xbf16, #tpu.memory_space<vmem>>, vector<1x32x128xbf16>
      %248 = vector.shape_cast %247 : vector<1x32x128xbf16> to vector<32x128xbf16>
      %249 = vector.shape_cast %245 : vector<32x128xbf16> to vector<1x32x128xbf16>
      tpu.vector_store %arg8[%c0_108, %246, %c0_109], %249 {strides = array<i32>} : memref<1x256x128xbf16, #tpu.memory_space<vmem>>, vector<1x32x128xbf16>,
      %c3_i32_110 = arith.constant 3 : i32
      %c32_i32_111 = arith.constant 32 : i32
      %250 = arith.muli %c3_i32_110, %c32_i32_111 : i32
      %251 = tpu.assume_multiple %250, 32 : i32
      %c0_112 = arith.constant 0 : index
      %252 = arith.index_cast %251 : i32 to index
      %c0_113 = arith.constant 0 : index
      %253 = vector.load %arg8[%c0_112, %252, %c0_113] : memref<1x256x128xbf16, #tpu.memory_space<vmem>>, vector<1x32x128xbf16>
      %254 = vector.shape_cast %253 : vector<1x32x128xbf16> to vector<32x128xbf16>
      %255 = arith.extf %254 : vector<32x128xbf16> to vector<32x128xf32>
      %256 = vector.broadcast %126 : vector<1x128xf32> to vector<32x128xf32>
      %257 = arith.mulf %255, %256 : vector<32x128xf32>
      %258 = vector.broadcast %129 : vector<1x128xf32> to vector<32x128xf32>
      %259 = arith.addf %257, %258 : vector<32x128xf32>
      %260 = math.absf %259 : vector<32x128xf32>
      %cst_114 = arith.constant 0.000000e+00 : f32
      %261 = vector.broadcast %cst_114 : f32 to vector<32x128xf32>
      %262 = arith.subf %261, %260 : vector<32x128xf32>
      %263 = math.exp %262 : vector<32x128xf32>
      %cst_115 = arith.constant 0.000000e+00 : f32
      %264 = vector.broadcast %cst_115 : f32 to vector<32x128xf32>
      %265 = arith.cmpf oge, %259, %264 : vector<32x128xf32>
      %cst_116 = arith.constant 2.000000e+00 : f32
      %266 = vector.broadcast %cst_116 : f32 to vector<32x128xf32>
      %267 = arith.mulf %266, %263 : vector<32x128xf32>
      %cst_117 = arith.constant 1.000000e+00 : f32
      %268 = vector.broadcast %cst_117 : f32 to vector<32x128xf32>
      %269 = arith.addf %268, %267 : vector<32x128xf32>
      %cst_118 = arith.constant 2.000000e+00 : f32
      %270 = vector.broadcast %cst_118 : f32 to vector<32x128xf32>
      %271 = arith.addf %263, %270 : vector<32x128xf32>
      %272 = arith.mulf %263, %271 : vector<32x128xf32>
      %273 = arith.select %265, %269, %272 : vector<32x128xi1>, vector<32x128xf32>
      %cst_119 = arith.constant 0.000000e+00 : f32
      %274 = vector.broadcast %cst_119 : f32 to vector<32x128xf32>
      %275 = arith.cmpf oge, %259, %274 : vector<32x128xf32>
      %cst_120 = arith.constant 2.000000e+00 : f32
      %276 = vector.broadcast %cst_120 : f32 to vector<32x128xf32>
      %277 = arith.mulf %276, %263 : vector<32x128xf32>
      %278 = arith.mulf %277, %263 : vector<32x128xf32>
      %cst_121 = arith.constant 2.000000e+00 : f32
      %279 = vector.broadcast %cst_121 : f32 to vector<32x128xf32>
      %280 = arith.select %275, %278, %279 : vector<32x128xi1>, vector<32x128xf32>
      %281 = arith.addf %273, %280 : vector<32x128xf32>
      %282 = arith.mulf %259, %273 : vector<32x128xf32>
      %283 = tpu.reciprocal %281 {approx = true} : vector<32x128xf32> -> vector<32x128xf32>
      %284 = arith.mulf %282, %283 : vector<32x128xf32>
      %285 = arith.truncf %284 : vector<32x128xf32> to vector<32x128xbf16>
      %c0_122 = arith.constant 0 : index
      %286 = arith.index_cast %251 : i32 to index
      %c0_123 = arith.constant 0 : index
      %287 = vector.load %arg8[%c0_122, %286, %c0_123] : memref<1x256x128xbf16, #tpu.memory_space<vmem>>, vector<1x32x128xbf16>
      %288 = vector.shape_cast %287 : vector<1x32x128xbf16> to vector<32x128xbf16>
      %289 = vector.shape_cast %285 : vector<32x128xbf16> to vector<1x32x128xbf16>
      tpu.vector_store %arg8[%c0_122, %286, %c0_123], %289 {strides = array<i32>} : memref<1x256x128xbf16, #tpu.memory_space<vmem>>, vector<1x32x128xbf16>,
      %c4_i32_124 = arith.constant 4 : i32
      %c32_i32_125 = arith.constant 32 : i32
      %290 = arith.muli %c4_i32_124, %c32_i32_125 : i32
      %291 = tpu.assume_multiple %290, 32 : i32
      %c0_126 = arith.constant 0 : index
      %292 = arith.index_cast %291 : i32 to index
      %c0_127 = arith.constant 0 : index
      %293 = vector.load %arg8[%c0_126, %292, %c0_127] : memref<1x256x128xbf16, #tpu.memory_space<vmem>>, vector<1x32x128xbf16>
      %294 = vector.shape_cast %293 : vector<1x32x128xbf16> to vector<32x128xbf16>
      %295 = arith.extf %294 : vector<32x128xbf16> to vector<32x128xf32>
      %296 = vector.broadcast %126 : vector<1x128xf32> to vector<32x128xf32>
      %297 = arith.mulf %295, %296 : vector<32x128xf32>
      %298 = vector.broadcast %129 : vector<1x128xf32> to vector<32x128xf32>
      %299 = arith.addf %297, %298 : vector<32x128xf32>
      %300 = math.absf %299 : vector<32x128xf32>
      %cst_128 = arith.constant 0.000000e+00 : f32
      %301 = vector.broadcast %cst_128 : f32 to vector<32x128xf32>
      %302 = arith.subf %301, %300 : vector<32x128xf32>
      %303 = math.exp %302 : vector<32x128xf32>
      %cst_129 = arith.constant 0.000000e+00 : f32
      %304 = vector.broadcast %cst_129 : f32 to vector<32x128xf32>
      %305 = arith.cmpf oge, %299, %304 : vector<32x128xf32>
      %cst_130 = arith.constant 2.000000e+00 : f32
      %306 = vector.broadcast %cst_130 : f32 to vector<32x128xf32>
      %307 = arith.mulf %306, %303 : vector<32x128xf32>
      %cst_131 = arith.constant 1.000000e+00 : f32
      %308 = vector.broadcast %cst_131 : f32 to vector<32x128xf32>
      %309 = arith.addf %308, %307 : vector<32x128xf32>
      %cst_132 = arith.constant 2.000000e+00 : f32
      %310 = vector.broadcast %cst_132 : f32 to vector<32x128xf32>
      %311 = arith.addf %303, %310 : vector<32x128xf32>
      %312 = arith.mulf %303, %311 : vector<32x128xf32>
      %313 = arith.select %305, %309, %312 : vector<32x128xi1>, vector<32x128xf32>
      %cst_133 = arith.constant 0.000000e+00 : f32
      %314 = vector.broadcast %cst_133 : f32 to vector<32x128xf32>
      %315 = arith.cmpf oge, %299, %314 : vector<32x128xf32>
      %cst_134 = arith.constant 2.000000e+00 : f32
      %316 = vector.broadcast %cst_134 : f32 to vector<32x128xf32>
      %317 = arith.mulf %316, %303 : vector<32x128xf32>
      %318 = arith.mulf %317, %303 : vector<32x128xf32>
      %cst_135 = arith.constant 2.000000e+00 : f32
      %319 = vector.broadcast %cst_135 : f32 to vector<32x128xf32>
      %320 = arith.select %315, %318, %319 : vector<32x128xi1>, vector<32x128xf32>
      %321 = arith.addf %313, %320 : vector<32x128xf32>
      %322 = arith.mulf %299, %313 : vector<32x128xf32>
      %323 = tpu.reciprocal %321 {approx = true} : vector<32x128xf32> -> vector<32x128xf32>
      %324 = arith.mulf %322, %323 : vector<32x128xf32>
      %325 = arith.truncf %324 : vector<32x128xf32> to vector<32x128xbf16>
      %c0_136 = arith.constant 0 : index
      %326 = arith.index_cast %291 : i32 to index
      %c0_137 = arith.constant 0 : index
      %327 = vector.load %arg8[%c0_136, %326, %c0_137] : memref<1x256x128xbf16, #tpu.memory_space<vmem>>, vector<1x32x128xbf16>
      %328 = vector.shape_cast %327 : vector<1x32x128xbf16> to vector<32x128xbf16>
      %329 = vector.shape_cast %325 : vector<32x128xbf16> to vector<1x32x128xbf16>
      tpu.vector_store %arg8[%c0_136, %326, %c0_137], %329 {strides = array<i32>} : memref<1x256x128xbf16, #tpu.memory_space<vmem>>, vector<1x32x128xbf16>,
      %c5_i32 = arith.constant 5 : i32
      %c32_i32_138 = arith.constant 32 : i32
      %330 = arith.muli %c5_i32, %c32_i32_138 : i32
      %331 = tpu.assume_multiple %330, 32 : i32
      %c0_139 = arith.constant 0 : index
      %332 = arith.index_cast %331 : i32 to index
      %c0_140 = arith.constant 0 : index
      %333 = vector.load %arg8[%c0_139, %332, %c0_140] : memref<1x256x128xbf16, #tpu.memory_space<vmem>>, vector<1x32x128xbf16>
      %334 = vector.shape_cast %333 : vector<1x32x128xbf16> to vector<32x128xbf16>
      %335 = arith.extf %334 : vector<32x128xbf16> to vector<32x128xf32>
      %336 = vector.broadcast %126 : vector<1x128xf32> to vector<32x128xf32>
      %337 = arith.mulf %335, %336 : vector<32x128xf32>
      %338 = vector.broadcast %129 : vector<1x128xf32> to vector<32x128xf32>
      %339 = arith.addf %337, %338 : vector<32x128xf32>
      %340 = math.absf %339 : vector<32x128xf32>
      %cst_141 = arith.constant 0.000000e+00 : f32
      %341 = vector.broadcast %cst_141 : f32 to vector<32x128xf32>
      %342 = arith.subf %341, %340 : vector<32x128xf32>
      %343 = math.exp %342 : vector<32x128xf32>
      %cst_142 = arith.constant 0.000000e+00 : f32
      %344 = vector.broadcast %cst_142 : f32 to vector<32x128xf32>
      %345 = arith.cmpf oge, %339, %344 : vector<32x128xf32>
      %cst_143 = arith.constant 2.000000e+00 : f32
      %346 = vector.broadcast %cst_143 : f32 to vector<32x128xf32>
      %347 = arith.mulf %346, %343 : vector<32x128xf32>
      %cst_144 = arith.constant 1.000000e+00 : f32
      %348 = vector.broadcast %cst_144 : f32 to vector<32x128xf32>
      %349 = arith.addf %348, %347 : vector<32x128xf32>
      %cst_145 = arith.constant 2.000000e+00 : f32
      %350 = vector.broadcast %cst_145 : f32 to vector<32x128xf32>
      %351 = arith.addf %343, %350 : vector<32x128xf32>
      %352 = arith.mulf %343, %351 : vector<32x128xf32>
      %353 = arith.select %345, %349, %352 : vector<32x128xi1>, vector<32x128xf32>
      %cst_146 = arith.constant 0.000000e+00 : f32
      %354 = vector.broadcast %cst_146 : f32 to vector<32x128xf32>
      %355 = arith.cmpf oge, %339, %354 : vector<32x128xf32>
      %cst_147 = arith.constant 2.000000e+00 : f32
      %356 = vector.broadcast %cst_147 : f32 to vector<32x128xf32>
      %357 = arith.mulf %356, %343 : vector<32x128xf32>
      %358 = arith.mulf %357, %343 : vector<32x128xf32>
      %cst_148 = arith.constant 2.000000e+00 : f32
      %359 = vector.broadcast %cst_148 : f32 to vector<32x128xf32>
      %360 = arith.select %355, %358, %359 : vector<32x128xi1>, vector<32x128xf32>
      %361 = arith.addf %353, %360 : vector<32x128xf32>
      %362 = arith.mulf %339, %353 : vector<32x128xf32>
      %363 = tpu.reciprocal %361 {approx = true} : vector<32x128xf32> -> vector<32x128xf32>
      %364 = arith.mulf %362, %363 : vector<32x128xf32>
      %365 = arith.truncf %364 : vector<32x128xf32> to vector<32x128xbf16>
      %c0_149 = arith.constant 0 : index
      %366 = arith.index_cast %331 : i32 to index
      %c0_150 = arith.constant 0 : index
      %367 = vector.load %arg8[%c0_149, %366, %c0_150] : memref<1x256x128xbf16, #tpu.memory_space<vmem>>, vector<1x32x128xbf16>
      %368 = vector.shape_cast %367 : vector<1x32x128xbf16> to vector<32x128xbf16>
      %369 = vector.shape_cast %365 : vector<32x128xbf16> to vector<1x32x128xbf16>
      tpu.vector_store %arg8[%c0_149, %366, %c0_150], %369 {strides = array<i32>} : memref<1x256x128xbf16, #tpu.memory_space<vmem>>, vector<1x32x128xbf16>,
      %c6_i32 = arith.constant 6 : i32
      %c32_i32_151 = arith.constant 32 : i32
      %370 = arith.muli %c6_i32, %c32_i32_151 : i32
      %371 = tpu.assume_multiple %370, 32 : i32
      %c0_152 = arith.constant 0 : index
      %372 = arith.index_cast %371 : i32 to index
      %c0_153 = arith.constant 0 : index
      %373 = vector.load %arg8[%c0_152, %372, %c0_153] : memref<1x256x128xbf16, #tpu.memory_space<vmem>>, vector<1x32x128xbf16>
      %374 = vector.shape_cast %373 : vector<1x32x128xbf16> to vector<32x128xbf16>
      %375 = arith.extf %374 : vector<32x128xbf16> to vector<32x128xf32>
      %376 = vector.broadcast %126 : vector<1x128xf32> to vector<32x128xf32>
      %377 = arith.mulf %375, %376 : vector<32x128xf32>
      %378 = vector.broadcast %129 : vector<1x128xf32> to vector<32x128xf32>
      %379 = arith.addf %377, %378 : vector<32x128xf32>
      %380 = math.absf %379 : vector<32x128xf32>
      %cst_154 = arith.constant 0.000000e+00 : f32
      %381 = vector.broadcast %cst_154 : f32 to vector<32x128xf32>
      %382 = arith.subf %381, %380 : vector<32x128xf32>
      %383 = math.exp %382 : vector<32x128xf32>
      %cst_155 = arith.constant 0.000000e+00 : f32
      %384 = vector.broadcast %cst_155 : f32 to vector<32x128xf32>
      %385 = arith.cmpf oge, %379, %384 : vector<32x128xf32>
      %cst_156 = arith.constant 2.000000e+00 : f32
      %386 = vector.broadcast %cst_156 : f32 to vector<32x128xf32>
      %387 = arith.mulf %386, %383 : vector<32x128xf32>
      %cst_157 = arith.constant 1.000000e+00 : f32
      %388 = vector.broadcast %cst_157 : f32 to vector<32x128xf32>
      %389 = arith.addf %388, %387 : vector<32x128xf32>
      %cst_158 = arith.constant 2.000000e+00 : f32
      %390 = vector.broadcast %cst_158 : f32 to vector<32x128xf32>
      %391 = arith.addf %383, %390 : vector<32x128xf32>
      %392 = arith.mulf %383, %391 : vector<32x128xf32>
      %393 = arith.select %385, %389, %392 : vector<32x128xi1>, vector<32x128xf32>
      %cst_159 = arith.constant 0.000000e+00 : f32
      %394 = vector.broadcast %cst_159 : f32 to vector<32x128xf32>
      %395 = arith.cmpf oge, %379, %394 : vector<32x128xf32>
      %cst_160 = arith.constant 2.000000e+00 : f32
      %396 = vector.broadcast %cst_160 : f32 to vector<32x128xf32>
      %397 = arith.mulf %396, %383 : vector<32x128xf32>
      %398 = arith.mulf %397, %383 : vector<32x128xf32>
      %cst_161 = arith.constant 2.000000e+00 : f32
      %399 = vector.broadcast %cst_161 : f32 to vector<32x128xf32>
      %400 = arith.select %395, %398, %399 : vector<32x128xi1>, vector<32x128xf32>
      %401 = arith.addf %393, %400 : vector<32x128xf32>
      %402 = arith.mulf %379, %393 : vector<32x128xf32>
      %403 = tpu.reciprocal %401 {approx = true} : vector<32x128xf32> -> vector<32x128xf32>
      %404 = arith.mulf %402, %403 : vector<32x128xf32>
      %405 = arith.truncf %404 : vector<32x128xf32> to vector<32x128xbf16>
      %c0_162 = arith.constant 0 : index
      %406 = arith.index_cast %371 : i32 to index
      %c0_163 = arith.constant 0 : index
      %407 = vector.load %arg8[%c0_162, %406, %c0_163] : memref<1x256x128xbf16, #tpu.memory_space<vmem>>, vector<1x32x128xbf16>
      %408 = vector.shape_cast %407 : vector<1x32x128xbf16> to vector<32x128xbf16>
      %409 = vector.shape_cast %405 : vector<32x128xbf16> to vector<1x32x128xbf16>
      tpu.vector_store %arg8[%c0_162, %406, %c0_163], %409 {strides = array<i32>} : memref<1x256x128xbf16, #tpu.memory_space<vmem>>, vector<1x32x128xbf16>,
      %c7_i32 = arith.constant 7 : i32
      %c32_i32_164 = arith.constant 32 : i32
      %410 = arith.muli %c7_i32, %c32_i32_164 : i32
      %411 = tpu.assume_multiple %410, 32 : i32
      %c0_165 = arith.constant 0 : index
      %412 = arith.index_cast %411 : i32 to index
      %c0_166 = arith.constant 0 : index
      %413 = vector.load %arg8[%c0_165, %412, %c0_166] : memref<1x256x128xbf16, #tpu.memory_space<vmem>>, vector<1x32x128xbf16>
      %414 = vector.shape_cast %413 : vector<1x32x128xbf16> to vector<32x128xbf16>
      %415 = arith.extf %414 : vector<32x128xbf16> to vector<32x128xf32>
      %416 = vector.broadcast %126 : vector<1x128xf32> to vector<32x128xf32>
      %417 = arith.mulf %415, %416 : vector<32x128xf32>
      %418 = vector.broadcast %129 : vector<1x128xf32> to vector<32x128xf32>
      %419 = arith.addf %417, %418 : vector<32x128xf32>
      %420 = math.absf %419 : vector<32x128xf32>
      %cst_167 = arith.constant 0.000000e+00 : f32
      %421 = vector.broadcast %cst_167 : f32 to vector<32x128xf32>
      %422 = arith.subf %421, %420 : vector<32x128xf32>
      %423 = math.exp %422 : vector<32x128xf32>
      %cst_168 = arith.constant 0.000000e+00 : f32
      %424 = vector.broadcast %cst_168 : f32 to vector<32x128xf32>
      %425 = arith.cmpf oge, %419, %424 : vector<32x128xf32>
      %cst_169 = arith.constant 2.000000e+00 : f32
      %426 = vector.broadcast %cst_169 : f32 to vector<32x128xf32>
      %427 = arith.mulf %426, %423 : vector<32x128xf32>
      %cst_170 = arith.constant 1.000000e+00 : f32
      %428 = vector.broadcast %cst_170 : f32 to vector<32x128xf32>
      %429 = arith.addf %428, %427 : vector<32x128xf32>
      %cst_171 = arith.constant 2.000000e+00 : f32
      %430 = vector.broadcast %cst_171 : f32 to vector<32x128xf32>
      %431 = arith.addf %423, %430 : vector<32x128xf32>
      %432 = arith.mulf %423, %431 : vector<32x128xf32>
      %433 = arith.select %425, %429, %432 : vector<32x128xi1>, vector<32x128xf32>
      %cst_172 = arith.constant 0.000000e+00 : f32
      %434 = vector.broadcast %cst_172 : f32 to vector<32x128xf32>
      %435 = arith.cmpf oge, %419, %434 : vector<32x128xf32>
      %cst_173 = arith.constant 2.000000e+00 : f32
      %436 = vector.broadcast %cst_173 : f32 to vector<32x128xf32>
      %437 = arith.mulf %436, %423 : vector<32x128xf32>
      %438 = arith.mulf %437, %423 : vector<32x128xf32>
      %cst_174 = arith.constant 2.000000e+00 : f32
      %439 = vector.broadcast %cst_174 : f32 to vector<32x128xf32>
      %440 = arith.select %435, %438, %439 : vector<32x128xi1>, vector<32x128xf32>
      %441 = arith.addf %433, %440 : vector<32x128xf32>
      %442 = arith.mulf %419, %433 : vector<32x128xf32>
      %443 = tpu.reciprocal %441 {approx = true} : vector<32x128xf32> -> vector<32x128xf32>
      %444 = arith.mulf %442, %443 : vector<32x128xf32>
      %445 = arith.truncf %444 : vector<32x128xf32> to vector<32x128xbf16>
      %c0_175 = arith.constant 0 : index
      %446 = arith.index_cast %411 : i32 to index
      %c0_176 = arith.constant 0 : index
      %447 = vector.load %arg8[%c0_175, %446, %c0_176] : memref<1x256x128xbf16, #tpu.memory_space<vmem>>, vector<1x32x128xbf16>
      %448 = vector.shape_cast %447 : vector<1x32x128xbf16> to vector<32x128xbf16>
      %449 = vector.shape_cast %445 : vector<32x128xbf16> to vector<1x32x128xbf16>
      tpu.vector_store %arg8[%c0_175, %446, %c0_176], %449 {strides = array<i32>} : memref<1x256x128xbf16, #tpu.memory_space<vmem>>, vector<1x32x128xbf16>,
      %c8_i32 = arith.constant 8 : i32
    } else {
    }
    return
  }
  func.func @transform_0(%arg0: i32, %arg1: i32) -> (i32, i32, i32) {
    %c0_i32 = arith.constant 0 : i32
    %c0_i32_0 = arith.constant 0 : i32
    return %arg0, %arg1, %c0_i32 : i32, i32, i32
  }
  func.func @transform_1(%arg0: i32, %arg1: i32) -> (i32, i32) {
    %c0_i32 = arith.constant 0 : i32
    %c0_i32_0 = arith.constant 0 : i32
    %c0_i32_1 = arith.constant 0 : i32
    return %c0_i32, %c0_i32_0 : i32, i32
  }
  func.func @transform_2(%arg0: i32, %arg1: i32) -> (i32, i32) {
    %c0_i32 = arith.constant 0 : i32
    %c0_i32_0 = arith.constant 0 : i32
    %c0_i32_1 = arith.constant 0 : i32
    return %c0_i32, %c0_i32_0 : i32, i32
  }
  func.func @transform_3(%arg0: i32, %arg1: i32) -> (i32, i32) {
    %c0_i32 = arith.constant 0 : i32
    %c0_i32_0 = arith.constant 0 : i32
    %c0_i32_1 = arith.constant 0 : i32
    return %c0_i32, %c0_i32_0 : i32, i32
  }
  func.func @transform_4(%arg0: i32, %arg1: i32) -> (i32, i32) {
    %c0_i32 = arith.constant 0 : i32
    %c0_i32_0 = arith.constant 0 : i32
    %c0_i32_1 = arith.constant 0 : i32
    return %c0_i32, %c0_i32_0 : i32, i32
  }
  func.func @transform_5(%arg0: i32, %arg1: i32) -> (i32, i32) {
    %c0_i32 = arith.constant 0 : i32
    %c0_i32_0 = arith.constant 0 : i32
    %c0_i32_1 = arith.constant 0 : i32
    return %c0_i32, %c0_i32_0 : i32, i32
  }
  func.func @transform_6(%arg0: i32, %arg1: i32) -> (i32, i32, i32) {
    %c0_i32 = arith.constant 0 : i32
    %c0_i32_0 = arith.constant 0 : i32
    %c0_i32_1 = arith.constant 0 : i32
    return %arg0, %c0_i32, %c0_i32_0 : i32, i32, i32
  }
}

</mosaic_0001>

<llo_original>
// kernel: tpu_custom_call.1
$region0: #{tpu_custom_call.1}
  #allocation0 [shape = 'u32[]', space=smem, size = 0x4, offset = 0x4, fixed_abs, tag = 'smem constant byte address 0x4 - core index']
  #allocation1 [shape = 'u32[144,128]{1,0:T(1,128)}', space=vmem, size = 0x12000, scoped, tag = 'internal scratch']
  #allocation2 [shape = 'f32[1,128]{1,0:T(1,128)}', space=vmem, size = 0x200, scoped, tag = 'scratch operand']
  #allocation3 [shape = 'f32[1,128]{1,0:T(1,128)}', space=vmem, size = 0x200, scoped, tag = 'scratch operand']
  %s0 = inlined_call_operand.vmem [shape: bf16[2,256,36], index: 0, kind: input, shape index: {}]
  %s1 = inlined_call_operand.vmem [shape: bf16[36,128], index: 1, kind: input, shape index: {}]
  %s2 = inlined_call_operand.vmem [shape: f32[1,128], index: 2, kind: input, shape index: {}]
  %s3 = inlined_call_operand.vmem [shape: f32[1,128], index: 3, kind: input, shape index: {}]
  %s4 = inlined_call_operand.vmem [shape: f32[1,128], index: 4, kind: input, shape index: {}]
  %s5 = inlined_call_operand.vmem [shape: f32[128,128], index: 5, kind: input, shape index: {}]
  %s6 = inlined_call_operand.hbm [shape: bf16[2,256,128], index: 6, kind: output, shape index: {}]
  %s7 = sld [smem:[#allocation0]]
  $region65: #{tpu_custom_call.1} parent=0
    _
  %s9 = ssub.s32 1, %s7
  %s10 = scalar_select 0, %s9, %s7
  $region1: #{tpu_custom_call.1} parent=0
    #allocation4 [shape = 'u8[131072]{0}', space=vmem, size = 0x20000, scoped, tag = 'output window, operand 0']
    #allocation5 [shape = 's32[2]{0}', space=sflag, size = 0x8, scoped, tag = 'scoped memory for tpu_custom_call.1']
    %11 = vsyncpa [#allocation5], 0
    %s12 = scalar_lea.sflag [#allocation5], 1
    %13 = vsyncpa %s12, 0
    loop: start=0, step=1, limit=6
    $region2: #{tpu_custom_call.1} parent=1 // loop_pre_header
      _
    $region3: #{tpu_custom_call.1} parent=1 // loop_header
      %s15 = sphi 0, %s19
      %p16 = scmp.ge.s32.totalorder %s15, 6
      %s22 = sphi 0, %s34
      %s23 = sphi 0, %s30
      %s24 = sphi 0, %s22
      %s25 = sphi 0, %s23
      %s26 = sphi 0, %s24
      %s27 = sphi 0, %s25
      %s39 = sphi 0, %s41
      %s42 = sphi 0, %s39
      %s43 = sphi 0, %s42
      %s59 = sphi 0, %s43
      %s63 = sphi 0, %s63
      %s65 = sphi 0, %s63
      %s66 = sphi 0, %s65
      %s80 = sphi 0, %s66
      %s84 = sphi 0, %s84
      %s86 = sphi 0, %s84
      %s87 = sphi 0, %s86
      %s101 = sphi 0, %s87
      %s105 = sphi 0, %s105
      %s107 = sphi 0, %s105
      %s108 = sphi 0, %s107
      %s122 = sphi 0, %s108
      %s126 = sphi 0, %s126
      %s128 = sphi 0, %s126
      %s129 = sphi 0, %s128
      %s143 = sphi 0, %s129
      %s147 = sphi 0, %s147
      %s149 = sphi 0, %s147
      %s150 = sphi 0, %s149
      %s164 = sphi 0, %s150
      %s170 = sphi 0, %s172
      %s173 = sphi 0, %s170
      %s174 = sphi 0, %s173
      %s190 = sphi 0, %s174
    $region4: #{tpu_custom_call.1} parent=1 // loop_header_branch
      %18 = sbr.rel (%p16) target = $region8
    $region5: #{tpu_custom_call.1} parent=1 // loop_body
      %s20 = ssub.s32 %s15, 1
      %s21 = ssub.s32 %s15, 2
      %s28 = sadd.s32 1, %s23
      %p29 = scmp.ge.s32.totalorder %s28, 2
      %s30 = scalar_select %p29, 0, %s28
      %s31 = sadd.s32 1, %s22
      %s32 = scalar_select %p29, %s31, %s22
      %p33 = scmp.ge.s32.totalorder %s32, 2
      %s34 = scalar_select %p33, 0, %s32
      %s35 = ssub.s32 %s22, %s34
      %s36 = ssub.s32 %s23, %s30
      %s37 = sor.u32 %s35, %s36
      %p38 = scmp.eq.s32.totalorder %s37, 0
      %s40 = sadd.s32 %s39, 1
      %s41 = scalar_select %p38, %s39, %s40
      %p44 = pneg %p38
      %p45 = scmp.eq.s32.totalorder %s15, 3
      %p46 = por %p44, %p45
      %p47 = scmp.ne.s32.totalorder %s39, %s42
      %p48 = scmp.eq.s32.totalorder %s15, 0
      %p49 = por %p47, %p48
      %p50 = scmp.ne.s32.totalorder %s39, %s42
      %p51 = scmp.eq.s32.totalorder %s20, 3
      %p52 = por %p50, %p51
      %p53 = scmp.ne.s32.totalorder %s42, %s43
      %p54 = scmp.eq.s32.totalorder %s20, 0
      %p55 = por %p53, %p54
      %p56 = scmp.ne.s32.totalorder %s42, %s43
      %p57 = scmp.eq.s32.totalorder %s21, 3
      %p58 = por %p56, %p57
      %p60 = scmp.ne.s32.totalorder %s43, %s59
      %p61 = scmp.eq.s32.totalorder %s21, 0
      %p62 = por %p60, %p61
      %s64 = sadd.s32 %s63, 1
      %p67 = scmp.eq.s32.totalorder %s15, 3
      %p68 = scmp.ne.s32.totalorder %s63, %s65
      %p69 = scmp.eq.s32.totalorder %s15, 0
      %p70 = por %p68, %p69
      %p71 = scmp.ne.s32.totalorder %s63, %s65
      %p72 = scmp.eq.s32.totalorder %s20, 3
      %p73 = por %p71, %p72
      %p74 = scmp.ne.s32.totalorder %s65, %s66
      %p75 = scmp.eq.s32.totalorder %s20, 0
      %p76 = por %p74, %p75
      %p77 = scmp.ne.s32.totalorder %s65, %s66
      %p78 = scmp.eq.s32.totalorder %s21, 3
      %p79 = por %p77, %p78
      %p81 = scmp.ne.s32.totalorder %s66, %s80
      %p82 = scmp.eq.s32.totalorder %s21, 0
      %p83 = por %p81, %p82
      %s85 = sadd.s32 %s84, 1
      %p88 = scmp.eq.s32.totalorder %s15, 3
      %p89 = scmp.ne.s32.totalorder %s84, %s86
      %p90 = scmp.eq.s32.totalorder %s15, 0
      %p91 = por %p89, %p90
      %p92 = scmp.ne.s32.totalorder %s84, %s86
      %p93 = scmp.eq.s32.totalorder %s20, 3
      %p94 = por %p92, %p93
      %p95 = scmp.ne.s32.totalorder %s86, %s87
      %p96 = scmp.eq.s32.totalorder %s20, 0
      %p97 = por %p95, %p96
      %p98 = scmp.ne.s32.totalorder %s86, %s87
      %p99 = scmp.eq.s32.totalorder %s21, 3
      %p100 = por %p98, %p99
      %p102 = scmp.ne.s32.totalorder %s87, %s101
      %p103 = scmp.eq.s32.totalorder %s21, 0
      %p104 = por %p102, %p103
      %s106 = sadd.s32 %s105, 1
      %p109 = scmp.eq.s32.totalorder %s15, 3
      %p110 = scmp.ne.s32.totalorder %s105, %s107
      %p111 = scmp.eq.s32.totalorder %s15, 0
      %p112 = por %p110, %p111
      %p113 = scmp.ne.s32.totalorder %s105, %s107
      %p114 = scmp.eq.s32.totalorder %s20, 3
      %p115 = por %p113, %p114
      %p116 = scmp.ne.s32.totalorder %s107, %s108
      %p117 = scmp.eq.s32.totalorder %s20, 0
      %p118 = por %p116, %p117
      %p119 = scmp.ne.s32.totalorder %s107, %s108
      %p120 = scmp.eq.s32.totalorder %s21, 3
      %p121 = por %p119, %p120
      %p123 = scmp.ne.s32.totalorder %s108, %s122
      %p124 = scmp.eq.s32.totalorder %s21, 0
      %p125 = por %p123, %p124
      %s127 = sadd.s32 %s126, 1
      %p130 = scmp.eq.s32.totalorder %s15, 3
      %p131 = scmp.ne.s32.totalorder %s126, %s128
      %p132 = scmp.eq.s32.totalorder %s15, 0
      %p133 = por %p131, %p132
      %p134 = scmp.ne.s32.totalorder %s126, %s128
      %p135 = scmp.eq.s32.totalorder %s20, 3
      %p136 = por %p134, %p135
      %p137 = scmp.ne.s32.totalorder %s128, %s129
      %p138 = scmp.eq.s32.totalorder %s20, 0
      %p139 = por %p137, %p138
      %p140 = scmp.ne.s32.totalorder %s128, %s129
      %p141 = scmp.eq.s32.totalorder %s21, 3
      %p142 = por %p140, %p141
      %p144 = scmp.ne.s32.totalorder %s129, %s143
      %p145 = scmp.eq.s32.totalorder %s21, 0
      %p146 = por %p144, %p145
      %s148 = sadd.s32 %s147, 1
      %p151 = scmp.eq.s32.totalorder %s15, 3
      %p152 = scmp.ne.s32.totalorder %s147, %s149
      %p153 = scmp.eq.s32.totalorder %s15, 0
      %p154 = por %p152, %p153
      %p155 = scmp.ne.s32.totalorder %s147, %s149
      %p156 = scmp.eq.s32.totalorder %s20, 3
      %p157 = por %p155, %p156
      %p158 = scmp.ne.s32.totalorder %s149, %s150
      %p159 = scmp.eq.s32.totalorder %s20, 0
      %p160 = por %p158, %p159
      %p161 = scmp.ne.s32.totalorder %s149, %s150
      %p162 = scmp.eq.s32.totalorder %s21, 3
      %p163 = por %p161, %p162
      %p165 = scmp.ne.s32.totalorder %s150, %s164
      %p166 = scmp.eq.s32.totalorder %s21, 0
      %p167 = por %p165, %p166
      %s168 = ssub.s32 %s22, %s34
      %p169 = scmp.eq.s32.totalorder %s168, 0
      %s171 = sadd.s32 %s170, 1
      %s172 = scalar_select %p169, %s170, %s171
      %p175 = pneg %p169
      %p176 = scmp.eq.s32.totalorder %s15, 3
      %p177 = por %p175, %p176
      %p178 = scmp.ne.s32.totalorder %s170, %s173
      %p179 = scmp.eq.s32.totalorder %s15, 0
      %p180 = por %p178, %p179
      %p181 = scmp.ne.s32.totalorder %s170, %s173
      %p182 = scmp.eq.s32.totalorder %s20, 3
      %p183 = por %p181, %p182
      %p184 = scmp.ne.s32.totalorder %s173, %s174
      %p185 = scmp.eq.s32.totalorder %s20, 0
      %p186 = por %p184, %p185
      %p187 = scmp.ne.s32.totalorder %s173, %s174
      %p188 = scmp.eq.s32.totalorder %s21, 3
      %p189 = por %p187, %p188
      %p191 = scmp.ne.s32.totalorder %s174, %s190
      %p192 = scmp.eq.s32.totalorder %s21, 0
      %p193 = por %p191, %p192
      %p194 = scmp.le.s32.totalorder 1, %s15
      %p195 = scmp.lt.s32.totalorder %s15, 5
      %p196 = pnand %p194, %p195
      %p197 = pneg %p196
      // Predicated region
      $region9: #{tpu_custom_call.1} parent=5 // pred_check
        _
      $region10: #{tpu_custom_call.1} parent=5 // pred_check_branch
        %199 = sbr.rel (%p196) target = $region12
      $region11: #{tpu_custom_call.1} parent=5 // pred_region
        %s200 = ssub.s32 %s15, 1
        // Predicated region
        $region13: #{tpu_custom_call.1} parent=11 // pred_check
          %p201 = pneg %p76
        $region14: #{tpu_custom_call.1} parent=11 // pred_check_branch
          %203 = sbr.rel (%p201) target = $region16
        $region15: #{tpu_custom_call.1} parent=11 // pred_region
          _
        $region16: #{tpu_custom_call.1} parent=11 // pred_fallthru
          _
        // Predicated region
        $region17: #{tpu_custom_call.1} parent=11 // pred_check
          %p204 = pneg %p97
        $region18: #{tpu_custom_call.1} parent=11 // pred_check_branch
          %206 = sbr.rel (%p204) target = $region20
        $region19: #{tpu_custom_call.1} parent=11 // pred_region
          _
        $region20: #{tpu_custom_call.1} parent=11 // pred_fallthru
          _
        // Predicated region
        $region21: #{tpu_custom_call.1} parent=11 // pred_check
          %p207 = pneg %p118
        $region22: #{tpu_custom_call.1} parent=11 // pred_check_branch
          %209 = sbr.rel (%p207) target = $region24
        $region23: #{tpu_custom_call.1} parent=11 // pred_region
          _
        $region24: #{tpu_custom_call.1} parent=11 // pred_fallthru
          _
        // Predicated region
        $region25: #{tpu_custom_call.1} parent=11 // pred_check
          %p210 = pneg %p139
        $region26: #{tpu_custom_call.1} parent=11 // pred_check_branch
          %212 = sbr.rel (%p210) target = $region28
        $region27: #{tpu_custom_call.1} parent=11 // pred_region
          _
        $region28: #{tpu_custom_call.1} parent=11 // pred_fallthru
          _
        // Predicated region
        $region29: #{tpu_custom_call.1} parent=11 // pred_check
          %p213 = pneg %p160
        $region30: #{tpu_custom_call.1} parent=11 // pred_check_branch
          %215 = sbr.rel (%p213) target = $region32
        $region31: #{tpu_custom_call.1} parent=11 // pred_region
          _
        $region32: #{tpu_custom_call.1} parent=11 // pred_fallthru
          _
      $region12: #{tpu_custom_call.1} parent=5 // pred_fallthru
        _
      %p216 = scmp.lt.s32.totalorder %s15, 4
      // Predicated region
      $region33: #{tpu_custom_call.1} parent=5 // pred_check
        %p217 = pneg %p216
      $region34: #{tpu_custom_call.1} parent=5 // pred_check_branch
        %219 = sbr.rel (%p217) target = $region36
      $region35: #{tpu_custom_call.1} parent=5 // pred_region
        // Predicated region
        $region37: #{tpu_custom_call.1} parent=35 // pred_check
          %p220 = pneg %p49
        $region38: #{tpu_custom_call.1} parent=35 // pred_check_branch
          %222 = sbr.rel (%p220) target = $region40
        $region39: #{tpu_custom_call.1} parent=35 // pred_region
          %s223 = smul.u32 16, %s23
          %p224 = scmp.lt.s32.totalorder %s22, 1
          %s225 = scalar_select %p224, %s22, 1
          %p226 = scmp.lt.s32.totalorder %s223, 31
          %s227 = scalar_select %p226, %s223, 31
          %s228 = smul.addr %s225, 32
          %s229 = sadd.s32 %s227, %s228
          %s230 = smul.addr %s229, 4
          %s231 = scalar_lea.vmem %s0, %s230
          %s232 = smul.u32 16, %s23
        $region40: #{tpu_custom_call.1} parent=35 // pred_fallthru
          _
      $region36: #{tpu_custom_call.1} parent=5 // pred_fallthru
        _
      %p233 = scmp.le.s32.totalorder 1, %s15
      %p234 = scmp.lt.s32.totalorder %s15, 5
      %p235 = pnand %p233, %p234
      %p236 = pneg %p235
      // Predicated region
      $region41: #{tpu_custom_call.1} parent=5 // pred_check
        _
      $region42: #{tpu_custom_call.1} parent=5 // pred_check_branch
        %238 = sbr.rel (%p235) target = $region44
      $region43: #{tpu_custom_call.1} parent=5 // pred_region
        %s239 = ssub.s32 %s15, 1
        %s240 = smul.u32 16, %s25
        %p241 = scmp.lt.s32.totalorder %s24, 1
        %s242 = scalar_select %p241, %s24, 1
        %p243 = scmp.lt.s32.totalorder %s240, 31
        %s244 = scalar_select %p243, %s240, 31
        %s245 = smul.addr %s242, 32
        %s246 = sadd.s32 %s244, %s245
        %s247 = smul.addr %s246, 4
        %s248 = scalar_lea.vmem %s0, %s247
        %p249 = pneg %p55
        %p250 = pneg %p52
        %p251 = pneg %p76
        %p252 = pneg %p73
        %p253 = pneg %p97
        %p254 = pneg %p94
        %p255 = pneg %p118
        %p256 = pneg %p115
        %p257 = pneg %p139
        %p258 = pneg %p136
        %p259 = pneg %p160
        %p260 = pneg %p157
        %p261 = pneg %p186
        %p262 = pneg %p183
        %s263 = sand.u32 %s173, 1
        %s264 = scalar_lea.sflag [#allocation5], %s263
        %s265 = sand.u32 %s173, 1
        %s266 = smul.addr %s265, 128
        %s267 = scalar_lea.vmem [#allocation4], %s266
        %s268 = smul.u32 16, %s25
        %p269 = scmp.lt.s32.totalorder %s24, 1
        %s270 = scalar_select %p269, %s24, 1
        %p271 = scmp.lt.s32.totalorder %s268, 31
        %s272 = scalar_select %p271, %s268, 31
        %s273 = smul.addr %s270, 32
        %s274 = sadd.s32 %s272, %s273
        %s275 = smul.addr %s274, 4
        %s276 = scalar_lea.vmem %s0, %s275
        %s277 = smul.u32 16, %s25
        %p279 = scmp.eq.s32.totalorder %s25, 0
        // Predicated region
        $region45: #{tpu_custom_call.1} parent=43 // pred_check
          %p280 = pneg %p279
        $region46: #{tpu_custom_call.1} parent=43 // pred_check_branch
          %282 = sbr.rel (%p280) target = $region48
        $region47: #{tpu_custom_call.1} parent=43 // pred_region
          %283 = vst [vmem:[#allocation2] sm:$0x1] 0.0
          %284 = vst [vmem:[#allocation3] sm:$0x1] 0.0
        $region48: #{tpu_custom_call.1} parent=43 // pred_fallthru
          _
        %s285 = smul.u32 %s25, 128
        %v286 = vld [vmem:[%s1] sm:$0xf]
        %v287 = vld [vmem:[%s1 + $0x4] sm:$0xf]
        %v288 = vld [vmem:[%s1 + $0x8] sm:$0xf]
        %v289 = vld [vmem:[%s1 + $0xc] sm:$0xf]
        %v290 = vld [vmem:[%s1 + $0x10] sm:$0x3]
        %v291 = vld [vmem:[%s2] sm:$0x1]
        %v292 = vld [vmem:[%s276] sm:$0xf]
        %v293 = vld [vmem:[%s276 + $0x4] sm:$0xf]
        %v294 = vld [vmem:[%s276 + $0x8] sm:$0xf]
        %v295 = vld [vmem:[%s276 + $0xc] sm:$0xf]
        %v297 = vlaneseq
        %v298 = vshrl.u32 %v297, 7
        %v299 = vsub.s32 0, %v298
        %v300 = vrot.slane %v291, %v299
        %v306 = vunpack.c.l.b16 %v292
        %v307 = vunpack.c.l.b16 %v293
        %v308 = vunpack.c.l.b16 %v294
        %v309 = vunpack.c.l.b16 %v295
        %v310 = vpack.c.b16 %v307, %v306
        %v311 = vpack.c.b16 %v309, %v308
        %v317 = vunpack.c.l.b16 %v286
        %v318 = vunpack.c.l.b16 %v287
        %v319 = vunpack.c.l.b16 %v288
        %v320 = vunpack.c.l.b16 %v289
        %v321 = vunpack.c.l.b16 %v290
        %v322 = vpack.c.b16 %v318, %v317
        %v323 = vpack.c.b16 %v320, %v319
        %v324 = vpack.c.b16 %v321, %v321
        %vm327 = vcmask 293888
        %v329 = vsel %vm327, %v310, 0
        %v332 = vsel %vm327, %v311, 0
        %vm334 = vcmask 1041408
        %v336 = vsel %vm334, %v324, 0
        %338 = vmatprep.subr.bf16.mxu0 0
        %339 = vmatpush1.bf16.msra.mxu0 0
        %340 = vmatprep.subr.bf16.mxu0 0
        %341 = vmatpush1.bf16.msra.mxu0 0
        %342 = vmatprep.subr.bf16.mxu0 0
        %343 = vmatpush1.bf16.msra.mxu0 0
        %344 = vmatprep.subr.bf16.mxu0 0
        %345 = vmatpush1.bf16.msra.mxu0 0
        %346 = vmatprep.subr.bf16.mxu0 0
        %347 = vmatpush1.bf16.msra.mxu0 0
        %348 = vmatprep.subr.bf16.mxu0 0
        %349 = vmatpush1.bf16.msra.mxu0 %v336
        %350 = vmatprep.subr.bf16.mxu0 0
        %351 = vmatpush1.bf16.msra.mxu0 %v323
        %352 = vmatprep.subr.bf16.mxu0 0
        %353 = vmatpush1.bf16.msra.mxu0 %v322
        %354 = vmatprep.subr.bf16.mxu0 0
        %355 = vmatpush2.bf16.msra.mxu0 0
        %356 = vmatprep.subr.bf16.mxu0 0
        %357 = vmatpush2.bf16.msra.mxu0 0
        %358 = vmatprep.subr.bf16.mxu0 0
        %359 = vmatpush2.bf16.msra.mxu0 0
        %360 = vmatprep.subr.bf16.mxu0 0
        %361 = vmatpush2.bf16.msra.mxu0 0
        %362 = vmatprep.subr.bf16.mxu0 0
        %363 = vmatpush2.bf16.msra.mxu0 0
        %364 = vmatprep.subr.bf16.mxu0 0
        %365 = vmatpush2.bf16.msra.mxu0 0
        %366 = vmatprep.subr.bf16.mxu0 0
        %367 = vmatpush2.bf16.msra.mxu0 0
        %368 = vmatprep.subr.bf16.mxu0 0
        %369 = vmatpush2.bf16.msra.mxu0 0
        %370 = vmatprep.mubr.bf16.mxu0 0
        %371 = vmatmul.mubr.bf16.gmra.mxu0 %v329
        %v372 = vpop.f32.mrf.mxu0
        %v373 = vadd.f32 %v300, %v372
        %v374 = vpop.f32.mrf.mxu0
        %v375 = vpop.f32.mrf.mxu0
        %v376 = vadd.f32 %v300, %v375
        %v377 = vpop.f32.mrf.mxu0
        %378 = vmatprep.mubr.bf16.mxu0 0
        %379 = vmatmul.mubr.bf16.gmra.mxu0 %v332
        %v380 = vpop.f32.mrf.mxu0
        %v381 = vadd.f32 %v300, %v380
        %v382 = vpop.f32.mrf.mxu0
        %v383 = vpop.f32.mrf.mxu0
        %v384 = vadd.f32 %v300, %v383
        %v385 = vpop.f32.mrf.mxu0
        %386 = vdwg.mxu0
        %v387 = vpack.c.bf16 %v376, %v373
        %v388 = vpack.c.bf16 %v384, %v381
        %v391 = vunpack.c.l.b16 %v387
        %v392 = vunpack.c.h.b16 %v387
        %v393 = vunpack.c.l.b16 %v388
        %v394 = vunpack.c.h.b16 %v388
        %v395 = vpack.c.b16 %v391, %v391
        %v396 = vpack.c.b16 %v392, %v392
        %v397 = vpack.c.b16 %v393, %v393
        %v398 = vpack.c.b16 %v394, %v394
        %s403 = sshra.s32 %s285, 3
        %s404 = sand.u32 %s285, 7
        %s405 = smul.addr %s403, 4
        %s406 = scalar_lea.vmem %s267, %s405 [#allocation4]
        %407 = vst [vmem:[%s406] sm:$0xf] %v395
        %408 = vst [vmem:[%s406 + $0x4] sm:$0xf] %v396
        %409 = vst [vmem:[%s406 + $0x8] sm:$0xf] %v397
        %410 = vst [vmem:[%s406 + $0xc] sm:$0xf] %v398
        %v411 = vadd.f32 %v373, %v376
        %v412 = vadd.f32 %v411, %v381
        %v413 = vadd.f32 %v412, %v384
        %v414 = vrot.slane %v413, 4
        %v415 = vadd.f32 %v413, %v414
        %v416 = vrot.slane %v415, 2
        %v417 = vadd.f32 %v415, %v416
        %v418 = vrot.slane %v417, 1
        %v419 = vadd.f32 %v417, %v418
        %v420 = vadd.f32 %v419, 0.0
        %v421 = vmul.f32 %v373, %v373
        %v422 = vmul.f32 %v376, %v376
        %v423 = vmul.f32 %v381, %v381
        %v424 = vmul.f32 %v384, %v384
        %v425 = vadd.f32 %v421, %v422
        %v426 = vadd.f32 %v425, %v423
        %v427 = vadd.f32 %v426, %v424
        %v428 = vrot.slane %v427, 4
        %v429 = vadd.f32 %v427, %v428
        %v430 = vrot.slane %v429, 2
        %v431 = vadd.f32 %v429, %v430
        %v432 = vrot.slane %v431, 1
        %v433 = vadd.f32 %v431, %v432
        %v434 = vadd.f32 %v433, 0.0
        %s435 = scalar_lea.vmem %s276, 16
        %v436 = vld [vmem:[%s435] sm:$0xf]
        %v437 = vld [vmem:[%s435 + $0x4] sm:$0xf]
        %v438 = vld [vmem:[%s435 + $0x8] sm:$0xf]
        %v439 = vld [vmem:[%s435 + $0xc] sm:$0xf]
        %v444 = vunpack.c.l.b16 %v436
        %v445 = vunpack.c.l.b16 %v437
        %v446 = vunpack.c.l.b16 %v438
        %v447 = vunpack.c.l.b16 %v439
        %v448 = vpack.c.b16 %v445, %v444
        %v449 = vpack.c.b16 %v447, %v446
        %v451 = vsel %vm327, %v448, 0
        %v454 = vsel %vm327, %v449, 0
        %456 = vmatprep.subr.bf16.mxu0 0
        %457 = vmatpush1.bf16.msra.mxu0 0
        %458 = vmatprep.subr.bf16.mxu0 0
        %459 = vmatpush1.bf16.msra.mxu0 0
        %460 = vmatprep.subr.bf16.mxu0 0
        %461 = vmatpush1.bf16.msra.mxu0 0
        %462 = vmatprep.subr.bf16.mxu0 0
        %463 = vmatpush1.bf16.msra.mxu0 0
        %464 = vmatprep.subr.bf16.mxu0 0
        %465 = vmatpush1.bf16.msra.mxu0 0
        %466 = vmatprep.subr.bf16.mxu0 0
        %467 = vmatpush1.bf16.msra.mxu0 %v336
        %468 = vmatprep.subr.bf16.mxu0 0
        %469 = vmatpush1.bf16.msra.mxu0 %v323
        %470 = vmatprep.subr.bf16.mxu0 0
        %471 = vmatpush1.bf16.msra.mxu0 %v322
        %472 = vmatprep.subr.bf16.mxu0 0
        %473 = vmatpush2.bf16.msra.mxu0 0
        %474 = vmatprep.subr.bf16.mxu0 0
        %475 = vmatpush2.bf16.msra.mxu0 0
        %476 = vmatprep.subr.bf16.mxu0 0
        %477 = vmatpush2.bf16.msra.mxu0 0
        %478 = vmatprep.subr.bf16.mxu0 0
        %479 = vmatpush2.bf16.msra.mxu0 0
        %480 = vmatprep.subr.bf16.mxu0 0
        %481 = vmatpush2.bf16.msra.mxu0 0
        %482 = vmatprep.subr.bf16.mxu0 0
        %483 = vmatpush2.bf16.msra.mxu0 0
        %484 = vmatprep.subr.bf16.mxu0 0
        %485 = vmatpush2.bf16.msra.mxu0 0
        %486 = vmatprep.subr.bf16.mxu0 0
        %487 = vmatpush2.bf16.msra.mxu0 0
        %488 = vmatprep.mubr.bf16.mxu0 0
        %489 = vmatmul.mubr.bf16.gmra.mxu0 %v451
        %v490 = vpop.f32.mrf.mxu0
        %v491 = vadd.f32 %v300, %v490
        %v492 = vpop.f32.mrf.mxu0
        %v493 = vpop.f32.mrf.mxu0
        %v494 = vadd.f32 %v300, %v493
        %v495 = vpop.f32.mrf.mxu0
        %496 = vmatprep.mubr.bf16.mxu0 0
        %497 = vmatmul.mubr.bf16.gmra.mxu0 %v454
        %v498 = vpop.f32.mrf.mxu0
        %v499 = vadd.f32 %v300, %v498
        %v500 = vpop.f32.mrf.mxu0
        %v501 = vpop.f32.mrf.mxu0
        %v502 = vadd.f32 %v300, %v501
        %v503 = vpop.f32.mrf.mxu0
        %504 = vdwg.mxu0
        %s505 = sadd.s32 %s285, 32
        %v506 = vpack.c.bf16 %v494, %v491
        %v507 = vpack.c.bf16 %v502, %v499
        %v510 = vunpack.c.l.b16 %v506
        %v511 = vunpack.c.h.b16 %v506
        %v512 = vunpack.c.l.b16 %v507
        %v513 = vunpack.c.h.b16 %v507
        %v514 = vpack.c.b16 %v510, %v510
        %v515 = vpack.c.b16 %v511, %v511
        %v516 = vpack.c.b16 %v512, %v512
        %v517 = vpack.c.b16 %v513, %v513
        %s522 = sshra.s32 %s505, 3
        %s523 = sand.u32 %s505, 7
        %s524 = smul.addr %s522, 4
        %s525 = scalar_lea.vmem %s267, %s524 [#allocation4]
        %526 = vst [vmem:[%s525] sm:$0xf] %v514
        %527 = vst [vmem:[%s525 + $0x4] sm:$0xf] %v515
        %528 = vst [vmem:[%s525 + $0x8] sm:$0xf] %v516
        %529 = vst [vmem:[%s525 + $0xc] sm:$0xf] %v517
        %v530 = vadd.f32 %v491, %v494
        %v531 = vadd.f32 %v530, %v499
        %v532 = vadd.f32 %v531, %v502
        %v533 = vrot.slane %v532, 4
        %v534 = vadd.f32 %v532, %v533
        %v535 = vrot.slane %v534, 2
        %v536 = vadd.f32 %v534, %v535
        %v537 = vrot.slane %v536, 1
        %v538 = vadd.f32 %v536, %v537
        %v539 = vadd.f32 %v420, %v538
        %v540 = vmul.f32 %v491, %v491
        %v541 = vmul.f32 %v494, %v494
        %v542 = vmul.f32 %v499, %v499
        %v543 = vmul.f32 %v502, %v502
        %v544 = vadd.f32 %v540, %v541
        %v545 = vadd.f32 %v544, %v542
        %v546 = vadd.f32 %v545, %v543
        %v547 = vrot.slane %v546, 4
        %v548 = vadd.f32 %v546, %v547
        %v549 = vrot.slane %v548, 2
        %v550 = vadd.f32 %v548, %v549
        %v551 = vrot.slane %v550, 1
        %v552 = vadd.f32 %v550, %v551
        %v553 = vadd.f32 %v434, %v552
        %s554 = scalar_lea.vmem %s276, 32
        %v555 = vld [vmem:[%s554] sm:$0xf]
        %v556 = vld [vmem:[%s554 + $0x4] sm:$0xf]
        %v557 = vld [vmem:[%s554 + $0x8] sm:$0xf]
        %v558 = vld [vmem:[%s554 + $0xc] sm:$0xf]
        %v563 = vunpack.c.l.b16 %v555
        %v564 = vunpack.c.l.b16 %v556
        %v565 = vunpack.c.l.b16 %v557
        %v566 = vunpack.c.l.b16 %v558
        %v567 = vpack.c.b16 %v564, %v563
        %v568 = vpack.c.b16 %v566, %v565
        %v570 = vsel %vm327, %v567, 0
        %v573 = vsel %vm327, %v568, 0
        %575 = vmatprep.subr.bf16.mxu0 0
        %576 = vmatpush1.bf16.msra.mxu0 0
        %577 = vmatprep.subr.bf16.mxu0 0
        %578 = vmatpush1.bf16.msra.mxu0 0
        %579 = vmatprep.subr.bf16.mxu0 0
        %580 = vmatpush1.bf16.msra.mxu0 0
        %581 = vmatprep.subr.bf16.mxu0 0
        %582 = vmatpush1.bf16.msra.mxu0 0
        %583 = vmatprep.subr.bf16.mxu0 0
        %584 = vmatpush1.bf16.msra.mxu0 0
        %585 = vmatprep.subr.bf16.mxu0 0
        %586 = vmatpush1.bf16.msra.mxu0 %v336
        %587 = vmatprep.subr.bf16.mxu0 0
        %588 = vmatpush1.bf16.msra.mxu0 %v323
        %589 = vmatprep.subr.bf16.mxu0 0
        %590 = vmatpush1.bf16.msra.mxu0 %v322
        %591 = vmatprep.subr.bf16.mxu0 0
        %592 = vmatpush2.bf16.msra.mxu0 0
        %593 = vmatprep.subr.bf16.mxu0 0
        %594 = vmatpush2.bf16.msra.mxu0 0
        %595 = vmatprep.subr.bf16.mxu0 0
        %596 = vmatpush2.bf16.msra.mxu0 0
        %597 = vmatprep.subr.bf16.mxu0 0
        %598 = vmatpush2.bf16.msra.mxu0 0
        %599 = vmatprep.subr.bf16.mxu0 0
        %600 = vmatpush2.bf16.msra.mxu0 0
        %601 = vmatprep.subr.bf16.mxu0 0
        %602 = vmatpush2.bf16.msra.mxu0 0
        %603 = vmatprep.subr.bf16.mxu0 0
        %604 = vmatpush2.bf16.msra.mxu0 0
        %605 = vmatprep.subr.bf16.mxu0 0
        %606 = vmatpush2.bf16.msra.mxu0 0
        %607 = vmatprep.mubr.bf16.mxu0 0
        %608 = vmatmul.mubr.bf16.gmra.mxu0 %v570
        %v609 = vpop.f32.mrf.mxu0
        %v610 = vadd.f32 %v300, %v609
        %v611 = vpop.f32.mrf.mxu0
        %v612 = vpop.f32.mrf.mxu0
        %v613 = vadd.f32 %v300, %v612
        %v614 = vpop.f32.mrf.mxu0
        %615 = vmatprep.mubr.bf16.mxu0 0
        %616 = vmatmul.mubr.bf16.gmra.mxu0 %v573
        %v617 = vpop.f32.mrf.mxu0
        %v618 = vadd.f32 %v300, %v617
        %v619 = vpop.f32.mrf.mxu0
        %v620 = vpop.f32.mrf.mxu0
        %v621 = vadd.f32 %v300, %v620
        %v622 = vpop.f32.mrf.mxu0
        %623 = vdwg.mxu0
        %s624 = sadd.s32 %s285, 64
        %v625 = vpack.c.bf16 %v613, %v610
        %v626 = vpack.c.bf16 %v621, %v618
        %v629 = vunpack.c.l.b16 %v625
        %v630 = vunpack.c.h.b16 %v625
        %v631 = vunpack.c.l.b16 %v626
        %v632 = vunpack.c.h.b16 %v626
        %v633 = vpack.c.b16 %v629, %v629
        %v634 = vpack.c.b16 %v630, %v630
        %v635 = vpack.c.b16 %v631, %v631
        %v636 = vpack.c.b16 %v632, %v632
        %s641 = sshra.s32 %s624, 3
        %s642 = sand.u32 %s624, 7
        %s643 = smul.addr %s641, 4
        %s644 = scalar_lea.vmem %s267, %s643 [#allocation4]
        %645 = vst [vmem:[%s644] sm:$0xf] %v633
        %646 = vst [vmem:[%s644 + $0x4] sm:$0xf] %v634
        %647 = vst [vmem:[%s644 + $0x8] sm:$0xf] %v635
        %648 = vst [vmem:[%s644 + $0xc] sm:$0xf] %v636
        %v649 = vadd.f32 %v610, %v613
        %v650 = vadd.f32 %v649, %v618
        %v651 = vadd.f32 %v650, %v621
        %v652 = vrot.slane %v651, 4
        %v653 = vadd.f32 %v651, %v652
        %v654 = vrot.slane %v653, 2
        %v655 = vadd.f32 %v653, %v654
        %v656 = vrot.slane %v655, 1
        %v657 = vadd.f32 %v655, %v656
        %v658 = vadd.f32 %v539, %v657
        %v659 = vmul.f32 %v610, %v610
        %v660 = vmul.f32 %v613, %v613
        %v661 = vmul.f32 %v618, %v618
        %v662 = vmul.f32 %v621, %v621
        %v663 = vadd.f32 %v659, %v660
        %v664 = vadd.f32 %v663, %v661
        %v665 = vadd.f32 %v664, %v662
        %v666 = vrot.slane %v665, 4
        %v667 = vadd.f32 %v665, %v666
        %v668 = vrot.slane %v667, 2
        %v669 = vadd.f32 %v667, %v668
        %v670 = vrot.slane %v669, 1
        %v671 = vadd.f32 %v669, %v670
        %v672 = vadd.f32 %v553, %v671
        %s673 = scalar_lea.vmem %s276, 48
        %v674 = vld [vmem:[%s673] sm:$0xf]
        %v675 = vld [vmem:[%s673 + $0x4] sm:$0xf]
        %v676 = vld [vmem:[%s673 + $0x8] sm:$0xf]
        %v677 = vld [vmem:[%s673 + $0xc] sm:$0xf]
        %v682 = vunpack.c.l.b16 %v674
        %v683 = vunpack.c.l.b16 %v675
        %v684 = vunpack.c.l.b16 %v676
        %v685 = vunpack.c.l.b16 %v677
        %v686 = vpack.c.b16 %v683, %v682
        %v687 = vpack.c.b16 %v685, %v684
        %v689 = vsel %vm327, %v686, 0
        %v692 = vsel %vm327, %v687, 0
        %694 = vmatprep.subr.bf16.mxu0 0
        %695 = vmatpush1.bf16.msra.mxu0 0
        %696 = vmatprep.subr.bf16.mxu0 0
        %697 = vmatpush1.bf16.msra.mxu0 0
        %698 = vmatprep.subr.bf16.mxu0 0
        %699 = vmatpush1.bf16.msra.mxu0 0
        %700 = vmatprep.subr.bf16.mxu0 0
        %701 = vmatpush1.bf16.msra.mxu0 0
        %702 = vmatprep.subr.bf16.mxu0 0
        %703 = vmatpush1.bf16.msra.mxu0 0
        %704 = vmatprep.subr.bf16.mxu0 0
        %705 = vmatpush1.bf16.msra.mxu0 %v336
        %706 = vmatprep.subr.bf16.mxu0 0
        %707 = vmatpush1.bf16.msra.mxu0 %v323
        %708 = vmatprep.subr.bf16.mxu0 0
        %709 = vmatpush1.bf16.msra.mxu0 %v322
        %710 = vmatprep.subr.bf16.mxu0 0
        %711 = vmatpush2.bf16.msra.mxu0 0
        %712 = vmatprep.subr.bf16.mxu0 0
        %713 = vmatpush2.bf16.msra.mxu0 0
        %714 = vmatprep.subr.bf16.mxu0 0
        %715 = vmatpush2.bf16.msra.mxu0 0
        %716 = vmatprep.subr.bf16.mxu0 0
        %717 = vmatpush2.bf16.msra.mxu0 0
        %718 = vmatprep.subr.bf16.mxu0 0
        %719 = vmatpush2.bf16.msra.mxu0 0
        %720 = vmatprep.subr.bf16.mxu0 0
        %721 = vmatpush2.bf16.msra.mxu0 0
        %722 = vmatprep.subr.bf16.mxu0 0
        %723 = vmatpush2.bf16.msra.mxu0 0
        %724 = vmatprep.subr.bf16.mxu0 0
        %725 = vmatpush2.bf16.msra.mxu0 0
        %726 = vmatprep.mubr.bf16.mxu0 0
        %727 = vmatmul.mubr.bf16.gmra.mxu0 %v689
        %v728 = vpop.f32.mrf.mxu0
        %v729 = vadd.f32 %v300, %v728
        %v730 = vpop.f32.mrf.mxu0
        %v731 = vpop.f32.mrf.mxu0
        %v732 = vadd.f32 %v300, %v731
        %v733 = vpop.f32.mrf.mxu0
        %734 = vmatprep.mubr.bf16.mxu0 0
        %735 = vmatmul.mubr.bf16.gmra.mxu0 %v692
        %v736 = vpop.f32.mrf.mxu0
        %v737 = vadd.f32 %v300, %v736
        %v738 = vpop.f32.mrf.mxu0
        %v739 = vpop.f32.mrf.mxu0
        %v740 = vadd.f32 %v300, %v739
        %v741 = vpop.f32.mrf.mxu0
        %742 = vdwg.mxu0
        %s743 = sadd.s32 %s285, 96
        %v744 = vpack.c.bf16 %v732, %v729
        %v745 = vpack.c.bf16 %v740, %v737
        %v748 = vunpack.c.l.b16 %v744
        %v749 = vunpack.c.h.b16 %v744
        %v750 = vunpack.c.l.b16 %v745
        %v751 = vunpack.c.h.b16 %v745
        %v752 = vpack.c.b16 %v748, %v748
        %v753 = vpack.c.b16 %v749, %v749
        %v754 = vpack.c.b16 %v750, %v750
        %v755 = vpack.c.b16 %v751, %v751
        %s760 = sshra.s32 %s743, 3
        %s761 = sand.u32 %s743, 7
        %s762 = smul.addr %s760, 4
        %s763 = scalar_lea.vmem %s267, %s762 [#allocation4]
        %764 = vst [vmem:[%s763] sm:$0xf] %v752
        %765 = vst [vmem:[%s763 + $0x4] sm:$0xf] %v753
        %766 = vst [vmem:[%s763 + $0x8] sm:$0xf] %v754
        %767 = vst [vmem:[%s763 + $0xc] sm:$0xf] %v755
        %v768 = vadd.f32 %v729, %v732
        %v769 = vadd.f32 %v768, %v737
        %v770 = vadd.f32 %v769, %v740
        %v771 = vrot.slane %v770, 4
        %v772 = vadd.f32 %v770, %v771
        %v773 = vrot.slane %v772, 2
        %v774 = vadd.f32 %v772, %v773
        %v775 = vrot.slane %v774, 1
        %v776 = vadd.f32 %v774, %v775
        %v777 = vadd.f32 %v658, %v776
        %v778 = vmul.f32 %v729, %v729
        %v779 = vmul.f32 %v732, %v732
        %v780 = vmul.f32 %v737, %v737
        %v781 = vmul.f32 %v740, %v740
        %v782 = vadd.f32 %v778, %v779
        %v783 = vadd.f32 %v782, %v780
        %v784 = vadd.f32 %v783, %v781
        %v785 = vrot.slane %v784, 4
        %v786 = vadd.f32 %v784, %v785
        %v787 = vrot.slane %v786, 2
        %v788 = vadd.f32 %v786, %v787
        %v789 = vrot.slane %v788, 1
        %v790 = vadd.f32 %v788, %v789
        %v791 = vadd.f32 %v672, %v790
        %v792 = vld [vmem:[#allocation2] sm:$0x1]
        %v793 = vadd.f32 %v792, %v777
        %794 = vst [vmem:[#allocation2] sm:$0x1] %v793
        %v795 = vld [vmem:[#allocation3] sm:$0x1]
        %v796 = vadd.f32 %v795, %v791
        %797 = vst [vmem:[#allocation3] sm:$0x1] %v796
        %p798 = scmp.eq.s32.totalorder %s25, 1
        // Predicated region
        $region49: #{tpu_custom_call.1} parent=43 // pred_check
          %p799 = pneg %p798
        $region50: #{tpu_custom_call.1} parent=43 // pred_check_branch
          %801 = sbr.rel (%p799) target = $region52
        $region51: #{tpu_custom_call.1} parent=43 // pred_region
          %v802 = vld [vmem:[#allocation2] sm:$0x1]
          %v803 = vld [vmem:[%s5] sm:$0xff]
          %v804 = vld [vmem:[%s5 + $0x8] sm:$0xff]
          %v805 = vld [vmem:[%s5 + $0x10] sm:$0xff]
          %v806 = vld [vmem:[%s5 + $0x18] sm:$0xff]
          %v807 = vld [vmem:[%s5 + $0x20] sm:$0xff]
          %v808 = vld [vmem:[%s5 + $0x28] sm:$0xff]
          %v809 = vld [vmem:[%s5 + $0x30] sm:$0xff]
          %v810 = vld [vmem:[%s5 + $0x38] sm:$0xff]
          %v811 = vld [vmem:[%s5 + $0x40] sm:$0xff]
          %v812 = vld [vmem:[%s5 + $0x48] sm:$0xff]
          %v813 = vld [vmem:[%s5 + $0x50] sm:$0xff]
          %v814 = vld [vmem:[%s5 + $0x58] sm:$0xff]
          %v815 = vld [vmem:[%s5 + $0x60] sm:$0xff]
          %v816 = vld [vmem:[%s5 + $0x68] sm:$0xff]
          %v817 = vld [vmem:[%s5 + $0x70] sm:$0xff]
          %v818 = vld [vmem:[%s5 + $0x78] sm:$0xff]
          %819 = vmatprep.subr.mxu0 0.0
          %820 = vmatpush1.msra.mxu0 %v818
          %821 = vmatprep.subr.mxu0 0.0
          %822 = vmatpush1.msra.mxu0 %v817
          %823 = vmatprep.subr.mxu0 0.0
          %824 = vmatpush1.msra.mxu0 %v816
          %825 = vmatprep.subr.mxu0 0.0
          %826 = vmatpush1.msra.mxu0 %v815
          %827 = vmatprep.subr.mxu0 0.0
          %828 = vmatpush1.msra.mxu0 %v814
          %829 = vmatprep.subr.mxu0 0.0
          %830 = vmatpush1.msra.mxu0 %v813
          %831 = vmatprep.subr.mxu0 0.0
          %832 = vmatpush1.msra.mxu0 %v812
          %833 = vmatprep.subr.mxu0 0.0
          %834 = vmatpush1.msra.mxu0 %v811
          %835 = vmatprep.subr.mxu0 0.0
          %836 = vmatpush1.msra.mxu0 %v810
          %837 = vmatprep.subr.mxu0 0.0
          %838 = vmatpush1.msra.mxu0 %v809
          %839 = vmatprep.subr.mxu0 0.0
          %840 = vmatpush1.msra.mxu0 %v808
          %841 = vmatprep.subr.mxu0 0.0
          %842 = vmatpush1.msra.mxu0 %v807
          %843 = vmatprep.subr.mxu0 0.0
          %844 = vmatpush1.msra.mxu0 %v806
          %845 = vmatprep.subr.mxu0 0.0
          %846 = vmatpush1.msra.mxu0 %v805
          %847 = vmatprep.subr.mxu0 0.0
          %848 = vmatpush1.msra.mxu0 %v804
          %849 = vmatprep.subr.mxu0 0.0
          %850 = vmatpush1.msra.mxu0 %v803
          %851 = vmatprep.subr.mxu0 0.0
          %852 = vmatpush2.msra.mxu0 0.0
          %853 = vmatprep.subr.mxu0 0.0
          %854 = vmatpush2.msra.mxu0 0.0
          %855 = vmatprep.subr.mxu0 0.0
          %856 = vmatpush2.msra.mxu0 0.0
          %857 = vmatprep.subr.mxu0 0.0
          %858 = vmatpush2.msra.mxu0 0.0
          %859 = vmatprep.subr.mxu0 0.0
          %860 = vmatpush2.msra.mxu0 0.0
          %861 = vmatprep.subr.mxu0 0.0
          %862 = vmatpush2.msra.mxu0 0.0
          %863 = vmatprep.subr.mxu0 0.0
          %864 = vmatpush2.msra.mxu0 0.0
          %865 = vmatprep.subr.mxu0 0.0
          %866 = vmatpush2.msra.mxu0 0.0
          %867 = vmatprep.subr.mxu0 0.0
          %868 = vmatpush2.msra.mxu0 0.0
          %869 = vmatprep.subr.mxu0 0.0
          %870 = vmatpush2.msra.mxu0 0.0
          %871 = vmatprep.subr.mxu0 0.0
          %872 = vmatpush2.msra.mxu0 0.0
          %873 = vmatprep.subr.mxu0 0.0
          %874 = vmatpush2.msra.mxu0 0.0
          %875 = vmatprep.subr.mxu0 0.0
          %876 = vmatpush2.msra.mxu0 0.0
          %877 = vmatprep.subr.mxu0 0.0
          %878 = vmatpush2.msra.mxu0 0.0
          %879 = vmatprep.subr.mxu0 0.0
          %880 = vmatpush2.msra.mxu0 0.0
          %881 = vmatprep.subr.mxu0 0.0
          %882 = vmatpush2.msra.mxu0 0.0
          %883 = vmatprep.mubr.f32.mxu0 0.0
          %884 = vmatmul.mubr.f32.gmra.mxu0 %v802
          %v885 = vpop.f32.mrf.mxu0
          %v886 = vadd.f32 0.0, %v885
          %v887 = vpop.f32.mrf.mxu0
          %888 = vdwg.mxu0
          %v889 = vmul.f32 %v886, 0.0009765625
          %v890 = vld [vmem:[#allocation3] sm:$0x1]
          %891 = vmatprep.subr.mxu0 0.0
          %892 = vmatpush1.msra.mxu0 %v818
          %893 = vmatprep.subr.mxu0 0.0
          %894 = vmatpush1.msra.mxu0 %v817
          %895 = vmatprep.subr.mxu0 0.0
          %896 = vmatpush1.msra.mxu0 %v816
          %897 = vmatprep.subr.mxu0 0.0
          %898 = vmatpush1.msra.mxu0 %v815
          %899 = vmatprep.subr.mxu0 0.0
          %900 = vmatpush1.msra.mxu0 %v814
          %901 = vmatprep.subr.mxu0 0.0
          %902 = vmatpush1.msra.mxu0 %v813
          %903 = vmatprep.subr.mxu0 0.0
          %904 = vmatpush1.msra.mxu0 %v812
          %905 = vmatprep.subr.mxu0 0.0
          %906 = vmatpush1.msra.mxu0 %v811
          %907 = vmatprep.subr.mxu0 0.0
          %908 = vmatpush1.msra.mxu0 %v810
          %909 = vmatprep.subr.mxu0 0.0
          %910 = vmatpush1.msra.mxu0 %v809
          %911 = vmatprep.subr.mxu0 0.0
          %912 = vmatpush1.msra.mxu0 %v808
          %913 = vmatprep.subr.mxu0 0.0
          %914 = vmatpush1.msra.mxu0 %v807
          %915 = vmatprep.subr.mxu0 0.0
          %916 = vmatpush1.msra.mxu0 %v806
          %917 = vmatprep.subr.mxu0 0.0
          %918 = vmatpush1.msra.mxu0 %v805
          %919 = vmatprep.subr.mxu0 0.0
          %920 = vmatpush1.msra.mxu0 %v804
          %921 = vmatprep.subr.mxu0 0.0
          %922 = vmatpush1.msra.mxu0 %v803
          %923 = vmatprep.subr.mxu0 0.0
          %924 = vmatpush2.msra.mxu0 0.0
          %925 = vmatprep.subr.mxu0 0.0
          %926 = vmatpush2.msra.mxu0 0.0
          %927 = vmatprep.subr.mxu0 0.0
          %928 = vmatpush2.msra.mxu0 0.0
          %929 = vmatprep.subr.mxu0 0.0
          %930 = vmatpush2.msra.mxu0 0.0
          %931 = vmatprep.subr.mxu0 0.0
          %932 = vmatpush2.msra.mxu0 0.0
          %933 = vmatprep.subr.mxu0 0.0
          %934 = vmatpush2.msra.mxu0 0.0
          %935 = vmatprep.subr.mxu0 0.0
          %936 = vmatpush2.msra.mxu0 0.0
          %937 = vmatprep.subr.mxu0 0.0
          %938 = vmatpush2.msra.mxu0 0.0
          %939 = vmatprep.subr.mxu0 0.0
          %940 = vmatpush2.msra.mxu0 0.0
          %941 = vmatprep.subr.mxu0 0.0
          %942 = vmatpush2.msra.mxu0 0.0
          %943 = vmatprep.subr.mxu0 0.0
          %944 = vmatpush2.msra.mxu0 0.0
          %945 = vmatprep.subr.mxu0 0.0
          %946 = vmatpush2.msra.mxu0 0.0
          %947 = vmatprep.subr.mxu0 0.0
          %948 = vmatpush2.msra.mxu0 0.0
          %949 = vmatprep.subr.mxu0 0.0
          %950 = vmatpush2.msra.mxu0 0.0
          %951 = vmatprep.subr.mxu0 0.0
          %952 = vmatpush2.msra.mxu0 0.0
          %953 = vmatprep.subr.mxu0 0.0
          %954 = vmatpush2.msra.mxu0 0.0
          %955 = vmatprep.mubr.f32.mxu0 0.0
          %956 = vmatmul.mubr.f32.gmra.mxu0 %v890
          %v957 = vpop.f32.mrf.mxu0
          %v958 = vadd.f32 0.0, %v957
          %v959 = vpop.f32.mrf.mxu0
          %960 = vdwg.mxu0
          %v961 = vmul.f32 %v958, 0.0009765625
          %v962 = vmul.f32 %v889, %v889
          %v963 = vsub.f32 %v961, %v962
          %v964 = vmax.f32 %v963, 0.0
          %v965 = vadd.f32 %v964, 1e-05
          %v966 = vrsqrt.pop %v965
          %v967 = vld [vmem:[%s3] sm:$0x1]
          %v968 = vmul.f32 %v966, %v967
          %v969 = vld [vmem:[%s4] sm:$0x1]
          %v970 = vmul.f32 %v889, %v968
          %v971 = vsub.f32 %v969, %v970
          %v972 = vld [vmem:[%s267] sm:$0xf]
          %v973 = vld [vmem:[%s267 + $0x4] sm:$0xf]
          %v974 = vld [vmem:[%s267 + $0x8] sm:$0xf]
          %v975 = vld [vmem:[%s267 + $0xc] sm:$0xf]
          %v976 = vunpack.c.l.bf16 %v972
          %v977 = vunpack.c.l.bf16 %v973
          %v978 = vunpack.c.l.bf16 %v974
          %v979 = vunpack.c.l.bf16 %v975
          %v980 = vlaneseq
          %v981 = vshrl.u32 %v980, 7
          %v982 = vsub.s32 0, %v981
          %v983 = vrot.slane %v968, %v982
          %v984 = vmul.f32 %v976, %v983
          %v985 = vmul.f32 %v977, %v983
          %v986 = vmul.f32 %v978, %v983
          %v987 = vmul.f32 %v979, %v983
          %v989 = vlaneseq
          %v990 = vshrl.u32 %v989, 7
          %v991 = vsub.s32 0, %v990
          %v992 = vrot.slane %v971, %v991
          %v994 = vadd.f32 %v984, %v992
          %v995 = vadd.f32 %v985, %v992
          %v996 = vadd.f32 %v986, %v992
          %v997 = vadd.f32 %v987, %v992
          %v998 = vand.u32 2147483647, %v994
          %v999 = vand.u32 2147483647, %v995
          %v1000 = vand.u32 2147483647, %v996
          %v1001 = vand.u32 2147483647, %v997
          %v1002 = vsub.f32 0.0, %v998
          %v1003 = vsub.f32 0.0, %v999
          %v1004 = vsub.f32 0.0, %v1000
          %v1005 = vsub.f32 0.0, %v1001
          %v1006 = vmul.f32 %v1002, 1.442695
          %v1007 = vpow.pop %v1006
          %v1008 = vmul.f32 %v1003, 1.442695
          %v1009 = vpow.pop %v1008
          %v1010 = vmul.f32 %v1004, 1.442695
          %v1011 = vpow.pop %v1010
          %v1012 = vmul.f32 %v1005, 1.442695
          %v1013 = vpow.pop %v1012
          %vm1014 = vcmp.ge.f32.partialorder %v994, 0.0
          %vm1015 = vcmp.ge.f32.partialorder %v995, 0.0
          %vm1016 = vcmp.ge.f32.partialorder %v996, 0.0
          %vm1017 = vcmp.ge.f32.partialorder %v997, 0.0
          %v1018 = vmul.f32 %v1007, 2.0
          %v1019 = vmul.f32 %v1009, 2.0
          %v1020 = vmul.f32 %v1011, 2.0
          %v1021 = vmul.f32 %v1013, 2.0
          %v1022 = vadd.f32 %v1018, 1.0
          %v1023 = vadd.f32 %v1019, 1.0
          %v1024 = vadd.f32 %v1020, 1.0
          %v1025 = vadd.f32 %v1021, 1.0
          %v1026 = vadd.f32 %v1007, 2.0
          %v1027 = vadd.f32 %v1009, 2.0
          %v1028 = vadd.f32 %v1011, 2.0
          %v1029 = vadd.f32 %v1013, 2.0
          %v1030 = vmul.f32 %v1007, %v1026
          %v1031 = vmul.f32 %v1009, %v1027
          %v1032 = vmul.f32 %v1011, %v1028
          %v1033 = vmul.f32 %v1013, %v1029
          %v1034 = vsel %vm1014, %v1022, %v1030
          %v1035 = vsel %vm1015, %v1023, %v1031
          %v1036 = vsel %vm1016, %v1024, %v1032
          %v1037 = vsel %vm1017, %v1025, %v1033
          %v1038 = vmul.f32 %v1018, %v1007
          %v1039 = vmul.f32 %v1019, %v1009
          %v1040 = vmul.f32 %v1020, %v1011
          %v1041 = vmul.f32 %v1021, %v1013
          %v1042 = vsel %vm1014, %v1038, 2.0
          %v1043 = vsel %vm1015, %v1039, 2.0
          %v1044 = vsel %vm1016, %v1040, 2.0
          %v1045 = vsel %vm1017, %v1041, 2.0
          %v1046 = vadd.f32 %v1034, %v1042
          %v1047 = vadd.f32 %v1035, %v1043
          %v1048 = vadd.f32 %v1036, %v1044
          %v1049 = vadd.f32 %v1037, %v1045
          %v1050 = vmul.f32 %v994, %v1034
          %v1051 = vmul.f32 %v995, %v1035
          %v1052 = vmul.f32 %v996, %v1036
          %v1053 = vmul.f32 %v997, %v1037
          %v1054 = vrcp.pop %v1046
          %v1055 = vrcp.pop %v1047
          %v1056 = vrcp.pop %v1048
          %v1057 = vrcp.pop %v1049
          %v1058 = vmul.f32 %v1050, %v1054
          %v1059 = vmul.f32 %v1051, %v1055
          %v1060 = vmul.f32 %v1052, %v1056
          %v1061 = vmul.f32 %v1053, %v1057
          %v1062 = vpack.c.bf16 %v1059, %v1058
          %v1063 = vpack.c.bf16 %v1061, %v1060
          %v1066 = vunpack.c.l.b16 %v1062
          %v1067 = vunpack.c.h.b16 %v1062
          %v1068 = vunpack.c.l.b16 %v1063
          %v1069 = vunpack.c.h.b16 %v1063
          %v1070 = vpack.c.b16 %v1066, %v1066
          %v1071 = vpack.c.b16 %v1067, %v1067
          %v1072 = vpack.c.b16 %v1068, %v1068
          %v1073 = vpack.c.b16 %v1069, %v1069
          %1078 = vst [vmem:[%s267] sm:$0xf] %v1070
          %1079 = vst [vmem:[%s267 + $0x4] sm:$0xf] %v1071
          %1080 = vst [vmem:[%s267 + $0x8] sm:$0xf] %v1072
          %1081 = vst [vmem:[%s267 + $0xc] sm:$0xf] %v1073
          %s1082 = scalar_lea.vmem %s267, 16 [#allocation4]
          %v1083 = vld [vmem:[%s1082] sm:$0xf]
          %v1084 = vld [vmem:[%s1082 + $0x4] sm:$0xf]
          %v1085 = vld [vmem:[%s1082 + $0x8] sm:$0xf]
          %v1086 = vld [vmem:[%s1082 + $0xc] sm:$0xf]
          %v1087 = vunpack.c.l.bf16 %v1083
          %v1088 = vunpack.c.l.bf16 %v1084
          %v1089 = vunpack.c.l.bf16 %v1085
          %v1090 = vunpack.c.l.bf16 %v1086
          %v1091 = vmul.f32 %v1087, %v983
          %v1092 = vmul.f32 %v1088, %v983
          %v1093 = vmul.f32 %v1089, %v983
          %v1094 = vmul.f32 %v1090, %v983
          %v1095 = vadd.f32 %v1091, %v992
          %v1096 = vadd.f32 %v1092, %v992
          %v1097 = vadd.f32 %v1093, %v992
          %v1098 = vadd.f32 %v1094, %v992
          %v1099 = vand.u32 2147483647, %v1095
          %v1100 = vand.u32 2147483647, %v1096
          %v1101 = vand.u32 2147483647, %v1097
          %v1102 = vand.u32 2147483647, %v1098
          %v1103 = vsub.f32 0.0, %v1099
          %v1104 = vsub.f32 0.0, %v1100
          %v1105 = vsub.f32 0.0, %v1101
          %v1106 = vsub.f32 0.0, %v1102
          %v1107 = vmul.f32 %v1103, 1.442695
          %v1108 = vpow.pop %v1107
          %v1109 = vmul.f32 %v1104, 1.442695
          %v1110 = vpow.pop %v1109
          %v1111 = vmul.f32 %v1105, 1.442695
          %v1112 = vpow.pop %v1111
          %v1113 = vmul.f32 %v1106, 1.442695
          %v1114 = vpow.pop %v1113
          %vm1115 = vcmp.ge.f32.partialorder %v1095, 0.0
          %vm1116 = vcmp.ge.f32.partialorder %v1096, 0.0
          %vm1117 = vcmp.ge.f32.partialorder %v1097, 0.0
          %vm1118 = vcmp.ge.f32.partialorder %v1098, 0.0
          %v1119 = vmul.f32 %v1108, 2.0
          %v1120 = vmul.f32 %v1110, 2.0
          %v1121 = vmul.f32 %v1112, 2.0
          %v1122 = vmul.f32 %v1114, 2.0
          %v1123 = vadd.f32 %v1119, 1.0
          %v1124 = vadd.f32 %v1120, 1.0
          %v1125 = vadd.f32 %v1121, 1.0
          %v1126 = vadd.f32 %v1122, 1.0
          %v1127 = vadd.f32 %v1108, 2.0
          %v1128 = vadd.f32 %v1110, 2.0
          %v1129 = vadd.f32 %v1112, 2.0
          %v1130 = vadd.f32 %v1114, 2.0
          %v1131 = vmul.f32 %v1108, %v1127
          %v1132 = vmul.f32 %v1110, %v1128
          %v1133 = vmul.f32 %v1112, %v1129
          %v1134 = vmul.f32 %v1114, %v1130
          %v1135 = vsel %vm1115, %v1123, %v1131
          %v1136 = vsel %vm1116, %v1124, %v1132
          %v1137 = vsel %vm1117, %v1125, %v1133
          %v1138 = vsel %vm1118, %v1126, %v1134
          %v1139 = vmul.f32 %v1119, %v1108
          %v1140 = vmul.f32 %v1120, %v1110
          %v1141 = vmul.f32 %v1121, %v1112
          %v1142 = vmul.f32 %v1122, %v1114
          %v1143 = vsel %vm1115, %v1139, 2.0
          %v1144 = vsel %vm1116, %v1140, 2.0
          %v1145 = vsel %vm1117, %v1141, 2.0
          %v1146 = vsel %vm1118, %v1142, 2.0
          %v1147 = vadd.f32 %v1135, %v1143
          %v1148 = vadd.f32 %v1136, %v1144
          %v1149 = vadd.f32 %v1137, %v1145
          %v1150 = vadd.f32 %v1138, %v1146
          %v1151 = vmul.f32 %v1095, %v1135
          %v1152 = vmul.f32 %v1096, %v1136
          %v1153 = vmul.f32 %v1097, %v1137
          %v1154 = vmul.f32 %v1098, %v1138
          %v1155 = vrcp.pop %v1147
          %v1156 = vrcp.pop %v1148
          %v1157 = vrcp.pop %v1149
          %v1158 = vrcp.pop %v1150
          %v1159 = vmul.f32 %v1151, %v1155
          %v1160 = vmul.f32 %v1152, %v1156
          %v1161 = vmul.f32 %v1153, %v1157
          %v1162 = vmul.f32 %v1154, %v1158
          %v1163 = vpack.c.bf16 %v1160, %v1159
          %v1164 = vpack.c.bf16 %v1162, %v1161
          %v1167 = vunpack.c.l.b16 %v1163
          %v1168 = vunpack.c.h.b16 %v1163
          %v1169 = vunpack.c.l.b16 %v1164
          %v1170 = vunpack.c.h.b16 %v1164
          %v1171 = vpack.c.b16 %v1167, %v1167
          %v1172 = vpack.c.b16 %v1168, %v1168
          %v1173 = vpack.c.b16 %v1169, %v1169
          %v1174 = vpack.c.b16 %v1170, %v1170
          %1179 = vst [vmem:[%s1082] sm:$0xf] %v1171
          %1180 = vst [vmem:[%s1082 + $0x4] sm:$0xf] %v1172
          %1181 = vst [vmem:[%s1082 + $0x8] sm:$0xf] %v1173
          %1182 = vst [vmem:[%s1082 + $0xc] sm:$0xf] %v1174
          %s1183 = scalar_lea.vmem %s267, 32 [#allocation4]
          %v1184 = vld [vmem:[%s1183] sm:$0xf]
          %v1185 = vld [vmem:[%s1183 + $0x4] sm:$0xf]
          %v1186 = vld [vmem:[%s1183 + $0x8] sm:$0xf]
          %v1187 = vld [vmem:[%s1183 + $0xc] sm:$0xf]
          %v1188 = vunpack.c.l.bf16 %v1184
          %v1189 = vunpack.c.l.bf16 %v1185
          %v1190 = vunpack.c.l.bf16 %v1186
          %v1191 = vunpack.c.l.bf16 %v1187
          %v1192 = vmul.f32 %v1188, %v983
          %v1193 = vmul.f32 %v1189, %v983
          %v1194 = vmul.f32 %v1190, %v983
          %v1195 = vmul.f32 %v1191, %v983
          %v1196 = vadd.f32 %v1192, %v992
          %v1197 = vadd.f32 %v1193, %v992
          %v1198 = vadd.f32 %v1194, %v992
          %v1199 = vadd.f32 %v1195, %v992
          %v1200 = vand.u32 2147483647, %v1196
          %v1201 = vand.u32 2147483647, %v1197
          %v1202 = vand.u32 2147483647, %v1198
          %v1203 = vand.u32 2147483647, %v1199
          %v1204 = vsub.f32 0.0, %v1200
          %v1205 = vsub.f32 0.0, %v1201
          %v1206 = vsub.f32 0.0, %v1202
          %v1207 = vsub.f32 0.0, %v1203
          %v1208 = vmul.f32 %v1204, 1.442695
          %v1209 = vpow.pop %v1208
          %v1210 = vmul.f32 %v1205, 1.442695
          %v1211 = vpow.pop %v1210
          %v1212 = vmul.f32 %v1206, 1.442695
          %v1213 = vpow.pop %v1212
          %v1214 = vmul.f32 %v1207, 1.442695
          %v1215 = vpow.pop %v1214
          %vm1216 = vcmp.ge.f32.partialorder %v1196, 0.0
          %vm1217 = vcmp.ge.f32.partialorder %v1197, 0.0
          %vm1218 = vcmp.ge.f32.partialorder %v1198, 0.0
          %vm1219 = vcmp.ge.f32.partialorder %v1199, 0.0
          %v1220 = vmul.f32 %v1209, 2.0
          %v1221 = vmul.f32 %v1211, 2.0
          %v1222 = vmul.f32 %v1213, 2.0
          %v1223 = vmul.f32 %v1215, 2.0
          %v1224 = vadd.f32 %v1220, 1.0
          %v1225 = vadd.f32 %v1221, 1.0
          %v1226 = vadd.f32 %v1222, 1.0
          %v1227 = vadd.f32 %v1223, 1.0
          %v1228 = vadd.f32 %v1209, 2.0
          %v1229 = vadd.f32 %v1211, 2.0
          %v1230 = vadd.f32 %v1213, 2.0
          %v1231 = vadd.f32 %v1215, 2.0
          %v1232 = vmul.f32 %v1209, %v1228
          %v1233 = vmul.f32 %v1211, %v1229
          %v1234 = vmul.f32 %v1213, %v1230
          %v1235 = vmul.f32 %v1215, %v1231
          %v1236 = vsel %vm1216, %v1224, %v1232
          %v1237 = vsel %vm1217, %v1225, %v1233
          %v1238 = vsel %vm1218, %v1226, %v1234
          %v1239 = vsel %vm1219, %v1227, %v1235
          %v1240 = vmul.f32 %v1220, %v1209
          %v1241 = vmul.f32 %v1221, %v1211
          %v1242 = vmul.f32 %v1222, %v1213
          %v1243 = vmul.f32 %v1223, %v1215
          %v1244 = vsel %vm1216, %v1240, 2.0
          %v1245 = vsel %vm1217, %v1241, 2.0
          %v1246 = vsel %vm1218, %v1242, 2.0
          %v1247 = vsel %vm1219, %v1243, 2.0
          %v1248 = vadd.f32 %v1236, %v1244
          %v1249 = vadd.f32 %v1237, %v1245
          %v1250 = vadd.f32 %v1238, %v1246
          %v1251 = vadd.f32 %v1239, %v1247
          %v1252 = vmul.f32 %v1196, %v1236
          %v1253 = vmul.f32 %v1197, %v1237
          %v1254 = vmul.f32 %v1198, %v1238
          %v1255 = vmul.f32 %v1199, %v1239
          %v1256 = vrcp.pop %v1248
          %v1257 = vrcp.pop %v1249
          %v1258 = vrcp.pop %v1250
          %v1259 = vrcp.pop %v1251
          %v1260 = vmul.f32 %v1252, %v1256
          %v1261 = vmul.f32 %v1253, %v1257
          %v1262 = vmul.f32 %v1254, %v1258
          %v1263 = vmul.f32 %v1255, %v1259
          %v1264 = vpack.c.bf16 %v1261, %v1260
          %v1265 = vpack.c.bf16 %v1263, %v1262
          %v1268 = vunpack.c.l.b16 %v1264
          %v1269 = vunpack.c.h.b16 %v1264
          %v1270 = vunpack.c.l.b16 %v1265
          %v1271 = vunpack.c.h.b16 %v1265
          %v1272 = vpack.c.b16 %v1268, %v1268
          %v1273 = vpack.c.b16 %v1269, %v1269
          %v1274 = vpack.c.b16 %v1270, %v1270
          %v1275 = vpack.c.b16 %v1271, %v1271
          %1280 = vst [vmem:[%s1183] sm:$0xf] %v1272
          %1281 = vst [vmem:[%s1183 + $0x4] sm:$0xf] %v1273
          %1282 = vst [vmem:[%s1183 + $0x8] sm:$0xf] %v1274
          %1283 = vst [vmem:[%s1183 + $0xc] sm:$0xf] %v1275
          %s1284 = scalar_lea.vmem %s267, 48 [#allocation4]
          %v1285 = vld [vmem:[%s1284] sm:$0xf]
          %v1286 = vld [vmem:[%s1284 + $0x4] sm:$0xf]
          %v1287 = vld [vmem:[%s1284 + $0x8] sm:$0xf]
          %v1288 = vld [vmem:[%s1284 + $0xc] sm:$0xf]
          %v1289 = vunpack.c.l.bf16 %v1285
          %v1290 = vunpack.c.l.bf16 %v1286
          %v1291 = vunpack.c.l.bf16 %v1287
          %v1292 = vunpack.c.l.bf16 %v1288
          %v1293 = vmul.f32 %v1289, %v983
          %v1294 = vmul.f32 %v1290, %v983
          %v1295 = vmul.f32 %v1291, %v983
          %v1296 = vmul.f32 %v1292, %v983
          %v1297 = vadd.f32 %v1293, %v992
          %v1298 = vadd.f32 %v1294, %v992
          %v1299 = vadd.f32 %v1295, %v992
          %v1300 = vadd.f32 %v1296, %v992
          %v1301 = vand.u32 2147483647, %v1297
          %v1302 = vand.u32 2147483647, %v1298
          %v1303 = vand.u32 2147483647, %v1299
          %v1304 = vand.u32 2147483647, %v1300
          %v1305 = vsub.f32 0.0, %v1301
          %v1306 = vsub.f32 0.0, %v1302
          %v1307 = vsub.f32 0.0, %v1303
          %v1308 = vsub.f32 0.0, %v1304
          %v1309 = vmul.f32 %v1305, 1.442695
          %v1310 = vpow.pop %v1309
          %v1311 = vmul.f32 %v1306, 1.442695
          %v1312 = vpow.pop %v1311
          %v1313 = vmul.f32 %v1307, 1.442695
          %v1314 = vpow.pop %v1313
          %v1315 = vmul.f32 %v1308, 1.442695
          %v1316 = vpow.pop %v1315
          %vm1317 = vcmp.ge.f32.partialorder %v1297, 0.0
          %vm1318 = vcmp.ge.f32.partialorder %v1298, 0.0
          %vm1319 = vcmp.ge.f32.partialorder %v1299, 0.0
          %vm1320 = vcmp.ge.f32.partialorder %v1300, 0.0
          %v1321 = vmul.f32 %v1310, 2.0
          %v1322 = vmul.f32 %v1312, 2.0
          %v1323 = vmul.f32 %v1314, 2.0
          %v1324 = vmul.f32 %v1316, 2.0
          %v1325 = vadd.f32 %v1321, 1.0
          %v1326 = vadd.f32 %v1322, 1.0
          %v1327 = vadd.f32 %v1323, 1.0
          %v1328 = vadd.f32 %v1324, 1.0
          %v1329 = vadd.f32 %v1310, 2.0
          %v1330 = vadd.f32 %v1312, 2.0
          %v1331 = vadd.f32 %v1314, 2.0
          %v1332 = vadd.f32 %v1316, 2.0
          %v1333 = vmul.f32 %v1310, %v1329
          %v1334 = vmul.f32 %v1312, %v1330
          %v1335 = vmul.f32 %v1314, %v1331
          %v1336 = vmul.f32 %v1316, %v1332
          %v1337 = vsel %vm1317, %v1325, %v1333
          %v1338 = vsel %vm1318, %v1326, %v1334
          %v1339 = vsel %vm1319, %v1327, %v1335
          %v1340 = vsel %vm1320, %v1328, %v1336
          %v1341 = vmul.f32 %v1321, %v1310
          %v1342 = vmul.f32 %v1322, %v1312
          %v1343 = vmul.f32 %v1323, %v1314
          %v1344 = vmul.f32 %v1324, %v1316
          %v1345 = vsel %vm1317, %v1341, 2.0
          %v1346 = vsel %vm1318, %v1342, 2.0
          %v1347 = vsel %vm1319, %v1343, 2.0
          %v1348 = vsel %vm1320, %v1344, 2.0
          %v1349 = vadd.f32 %v1337, %v1345
          %v1350 = vadd.f32 %v1338, %v1346
          %v1351 = vadd.f32 %v1339, %v1347
          %v1352 = vadd.f32 %v1340, %v1348
          %v1353 = vmul.f32 %v1297, %v1337
          %v1354 = vmul.f32 %v1298, %v1338
          %v1355 = vmul.f32 %v1299, %v1339
          %v1356 = vmul.f32 %v1300, %v1340
          %v1357 = vrcp.pop %v1349
          %v1358 = vrcp.pop %v1350
          %v1359 = vrcp.pop %v1351
          %v1360 = vrcp.pop %v1352
          %v1361 = vmul.f32 %v1353, %v1357
          %v1362 = vmul.f32 %v1354, %v1358
          %v1363 = vmul.f32 %v1355, %v1359
          %v1364 = vmul.f32 %v1356, %v1360
          %v1365 = vpack.c.bf16 %v1362, %v1361
          %v1366 = vpack.c.bf16 %v1364, %v1363
          %v1369 = vunpack.c.l.b16 %v1365
          %v1370 = vunpack.c.h.b16 %v1365
          %v1371 = vunpack.c.l.b16 %v1366
          %v1372 = vunpack.c.h.b16 %v1366
          %v1373 = vpack.c.b16 %v1369, %v1369
          %v1374 = vpack.c.b16 %v1370, %v1370
          %v1375 = vpack.c.b16 %v1371, %v1371
          %v1376 = vpack.c.b16 %v1372, %v1372
          %1381 = vst [vmem:[%s1284] sm:$0xf] %v1373
          %1382 = vst [vmem:[%s1284 + $0x4] sm:$0xf] %v1374
          %1383 = vst [vmem:[%s1284 + $0x8] sm:$0xf] %v1375
          %1384 = vst [vmem:[%s1284 + $0xc] sm:$0xf] %v1376
          %s1385 = scalar_lea.vmem %s267, 64 [#allocation4]
          %v1386 = vld [vmem:[%s1385] sm:$0xf]
          %v1387 = vld [vmem:[%s1385 + $0x4] sm:$0xf]
          %v1388 = vld [vmem:[%s1385 + $0x8] sm:$0xf]
          %v1389 = vld [vmem:[%s1385 + $0xc] sm:$0xf]
          %v1390 = vunpack.c.l.bf16 %v1386
          %v1391 = vunpack.c.l.bf16 %v1387
          %v1392 = vunpack.c.l.bf16 %v1388
          %v1393 = vunpack.c.l.bf16 %v1389
          %v1394 = vmul.f32 %v1390, %v983
          %v1395 = vmul.f32 %v1391, %v983
          %v1396 = vmul.f32 %v1392, %v983
          %v1397 = vmul.f32 %v1393, %v983
          %v1398 = vadd.f32 %v1394, %v992
          %v1399 = vadd.f32 %v1395, %v992
          %v1400 = vadd.f32 %v1396, %v992
          %v1401 = vadd.f32 %v1397, %v992
          %v1402 = vand.u32 2147483647, %v1398
          %v1403 = vand.u32 2147483647, %v1399
          %v1404 = vand.u32 2147483647, %v1400
          %v1405 = vand.u32 2147483647, %v1401
          %v1406 = vsub.f32 0.0, %v1402
          %v1407 = vsub.f32 0.0, %v1403
          %v1408 = vsub.f32 0.0, %v1404
          %v1409 = vsub.f32 0.0, %v1405
          %v1410 = vmul.f32 %v1406, 1.442695
          %v1411 = vpow.pop %v1410
          %v1412 = vmul.f32 %v1407, 1.442695
          %v1413 = vpow.pop %v1412
          %v1414 = vmul.f32 %v1408, 1.442695
          %v1415 = vpow.pop %v1414
          %v1416 = vmul.f32 %v1409, 1.442695
          %v1417 = vpow.pop %v1416
          %vm1418 = vcmp.ge.f32.partialorder %v1398, 0.0
          %vm1419 = vcmp.ge.f32.partialorder %v1399, 0.0
          %vm1420 = vcmp.ge.f32.partialorder %v1400, 0.0
          %vm1421 = vcmp.ge.f32.partialorder %v1401, 0.0
          %v1422 = vmul.f32 %v1411, 2.0
          %v1423 = vmul.f32 %v1413, 2.0
          %v1424 = vmul.f32 %v1415, 2.0
          %v1425 = vmul.f32 %v1417, 2.0
          %v1426 = vadd.f32 %v1422, 1.0
          %v1427 = vadd.f32 %v1423, 1.0
          %v1428 = vadd.f32 %v1424, 1.0
          %v1429 = vadd.f32 %v1425, 1.0
          %v1430 = vadd.f32 %v1411, 2.0
          %v1431 = vadd.f32 %v1413, 2.0
          %v1432 = vadd.f32 %v1415, 2.0
          %v1433 = vadd.f32 %v1417, 2.0
          %v1434 = vmul.f32 %v1411, %v1430
          %v1435 = vmul.f32 %v1413, %v1431
          %v1436 = vmul.f32 %v1415, %v1432
          %v1437 = vmul.f32 %v1417, %v1433
          %v1438 = vsel %vm1418, %v1426, %v1434
          %v1439 = vsel %vm1419, %v1427, %v1435
          %v1440 = vsel %vm1420, %v1428, %v1436
          %v1441 = vsel %vm1421, %v1429, %v1437
          %v1442 = vmul.f32 %v1422, %v1411
          %v1443 = vmul.f32 %v1423, %v1413
          %v1444 = vmul.f32 %v1424, %v1415
          %v1445 = vmul.f32 %v1425, %v1417
          %v1446 = vsel %vm1418, %v1442, 2.0
          %v1447 = vsel %vm1419, %v1443, 2.0
          %v1448 = vsel %vm1420, %v1444, 2.0
          %v1449 = vsel %vm1421, %v1445, 2.0
          %v1450 = vadd.f32 %v1438, %v1446
          %v1451 = vadd.f32 %v1439, %v1447
          %v1452 = vadd.f32 %v1440, %v1448
          %v1453 = vadd.f32 %v1441, %v1449
          %v1454 = vmul.f32 %v1398, %v1438
          %v1455 = vmul.f32 %v1399, %v1439
          %v1456 = vmul.f32 %v1400, %v1440
          %v1457 = vmul.f32 %v1401, %v1441
          %v1458 = vrcp.pop %v1450
          %v1459 = vrcp.pop %v1451
          %v1460 = vrcp.pop %v1452
          %v1461 = vrcp.pop %v1453
          %v1462 = vmul.f32 %v1454, %v1458
          %v1463 = vmul.f32 %v1455, %v1459
          %v1464 = vmul.f32 %v1456, %v1460
          %v1465 = vmul.f32 %v1457, %v1461
          %v1466 = vpack.c.bf16 %v1463, %v1462
          %v1467 = vpack.c.bf16 %v1465, %v1464
          %v1470 = vunpack.c.l.b16 %v1466
          %v1471 = vunpack.c.h.b16 %v1466
          %v1472 = vunpack.c.l.b16 %v1467
          %v1473 = vunpack.c.h.b16 %v1467
          %v1474 = vpack.c.b16 %v1470, %v1470
          %v1475 = vpack.c.b16 %v1471, %v1471
          %v1476 = vpack.c.b16 %v1472, %v1472
          %v1477 = vpack.c.b16 %v1473, %v1473
          %1482 = vst [vmem:[%s1385] sm:$0xf] %v1474
          %1483 = vst [vmem:[%s1385 + $0x4] sm:$0xf] %v1475
          %1484 = vst [vmem:[%s1385 + $0x8] sm:$0xf] %v1476
          %1485 = vst [vmem:[%s1385 + $0xc] sm:$0xf] %v1477
          %s1486 = scalar_lea.vmem %s267, 80 [#allocation4]
          %v1487 = vld [vmem:[%s1486] sm:$0xf]
          %v1488 = vld [vmem:[%s1486 + $0x4] sm:$0xf]
          %v1489 = vld [vmem:[%s1486 + $0x8] sm:$0xf]
          %v1490 = vld [vmem:[%s1486 + $0xc] sm:$0xf]
          %v1491 = vunpack.c.l.bf16 %v1487
          %v1492 = vunpack.c.l.bf16 %v1488
          %v1493 = vunpack.c.l.bf16 %v1489
          %v1494 = vunpack.c.l.bf16 %v1490
          %v1495 = vmul.f32 %v1491, %v983
          %v1496 = vmul.f32 %v1492, %v983
          %v1497 = vmul.f32 %v1493, %v983
          %v1498 = vmul.f32 %v1494, %v983
          %v1499 = vadd.f32 %v1495, %v992
          %v1500 = vadd.f32 %v1496, %v992
          %v1501 = vadd.f32 %v1497, %v992
          %v1502 = vadd.f32 %v1498, %v992
          %v1503 = vand.u32 2147483647, %v1499
          %v1504 = vand.u32 2147483647, %v1500
          %v1505 = vand.u32 2147483647, %v1501
          %v1506 = vand.u32 2147483647, %v1502
          %v1507 = vsub.f32 0.0, %v1503
          %v1508 = vsub.f32 0.0, %v1504
          %v1509 = vsub.f32 0.0, %v1505
          %v1510 = vsub.f32 0.0, %v1506
          %v1511 = vmul.f32 %v1507, 1.442695
          %v1512 = vpow.pop %v1511
          %v1513 = vmul.f32 %v1508, 1.442695
          %v1514 = vpow.pop %v1513
          %v1515 = vmul.f32 %v1509, 1.442695
          %v1516 = vpow.pop %v1515
          %v1517 = vmul.f32 %v1510, 1.442695
          %v1518 = vpow.pop %v1517
          %vm1519 = vcmp.ge.f32.partialorder %v1499, 0.0
          %vm1520 = vcmp.ge.f32.partialorder %v1500, 0.0
          %vm1521 = vcmp.ge.f32.partialorder %v1501, 0.0
          %vm1522 = vcmp.ge.f32.partialorder %v1502, 0.0
          %v1523 = vmul.f32 %v1512, 2.0
          %v1524 = vmul.f32 %v1514, 2.0
          %v1525 = vmul.f32 %v1516, 2.0
          %v1526 = vmul.f32 %v1518, 2.0
          %v1527 = vadd.f32 %v1523, 1.0
          %v1528 = vadd.f32 %v1524, 1.0
          %v1529 = vadd.f32 %v1525, 1.0
          %v1530 = vadd.f32 %v1526, 1.0
          %v1531 = vadd.f32 %v1512, 2.0
          %v1532 = vadd.f32 %v1514, 2.0
          %v1533 = vadd.f32 %v1516, 2.0
          %v1534 = vadd.f32 %v1518, 2.0
          %v1535 = vmul.f32 %v1512, %v1531
          %v1536 = vmul.f32 %v1514, %v1532
          %v1537 = vmul.f32 %v1516, %v1533
          %v1538 = vmul.f32 %v1518, %v1534
          %v1539 = vsel %vm1519, %v1527, %v1535
          %v1540 = vsel %vm1520, %v1528, %v1536
          %v1541 = vsel %vm1521, %v1529, %v1537
          %v1542 = vsel %vm1522, %v1530, %v1538
          %v1543 = vmul.f32 %v1523, %v1512
          %v1544 = vmul.f32 %v1524, %v1514
          %v1545 = vmul.f32 %v1525, %v1516
          %v1546 = vmul.f32 %v1526, %v1518
          %v1547 = vsel %vm1519, %v1543, 2.0
          %v1548 = vsel %vm1520, %v1544, 2.0
          %v1549 = vsel %vm1521, %v1545, 2.0
          %v1550 = vsel %vm1522, %v1546, 2.0
          %v1551 = vadd.f32 %v1539, %v1547
          %v1552 = vadd.f32 %v1540, %v1548
          %v1553 = vadd.f32 %v1541, %v1549
          %v1554 = vadd.f32 %v1542, %v1550
          %v1555 = vmul.f32 %v1499, %v1539
          %v1556 = vmul.f32 %v1500, %v1540
          %v1557 = vmul.f32 %v1501, %v1541
          %v1558 = vmul.f32 %v1502, %v1542
          %v1559 = vrcp.pop %v1551
          %v1560 = vrcp.pop %v1552
          %v1561 = vrcp.pop %v1553
          %v1562 = vrcp.pop %v1554
          %v1563 = vmul.f32 %v1555, %v1559
          %v1564 = vmul.f32 %v1556, %v1560
          %v1565 = vmul.f32 %v1557, %v1561
          %v1566 = vmul.f32 %v1558, %v1562
          %v1567 = vpack.c.bf16 %v1564, %v1563
          %v1568 = vpack.c.bf16 %v1566, %v1565
          %v1571 = vunpack.c.l.b16 %v1567
          %v1572 = vunpack.c.h.b16 %v1567
          %v1573 = vunpack.c.l.b16 %v1568
          %v1574 = vunpack.c.h.b16 %v1568
          %v1575 = vpack.c.b16 %v1571, %v1571
          %v1576 = vpack.c.b16 %v1572, %v1572
          %v1577 = vpack.c.b16 %v1573, %v1573
          %v1578 = vpack.c.b16 %v1574, %v1574
          %1583 = vst [vmem:[%s1486] sm:$0xf] %v1575
          %1584 = vst [vmem:[%s1486 + $0x4] sm:$0xf] %v1576
          %1585 = vst [vmem:[%s1486 + $0x8] sm:$0xf] %v1577
          %1586 = vst [vmem:[%s1486 + $0xc] sm:$0xf] %v1578
          %s1587 = scalar_lea.vmem %s267, 96 [#allocation4]
          %v1588 = vld [vmem:[%s1587] sm:$0xf]
          %v1589 = vld [vmem:[%s1587 + $0x4] sm:$0xf]
          %v1590 = vld [vmem:[%s1587 + $0x8] sm:$0xf]
          %v1591 = vld [vmem:[%s1587 + $0xc] sm:$0xf]
          %v1592 = vunpack.c.l.bf16 %v1588
          %v1593 = vunpack.c.l.bf16 %v1589
          %v1594 = vunpack.c.l.bf16 %v1590
          %v1595 = vunpack.c.l.bf16 %v1591
          %v1596 = vmul.f32 %v1592, %v983
          %v1597 = vmul.f32 %v1593, %v983
          %v1598 = vmul.f32 %v1594, %v983
          %v1599 = vmul.f32 %v1595, %v983
          %v1600 = vadd.f32 %v1596, %v992
          %v1601 = vadd.f32 %v1597, %v992
          %v1602 = vadd.f32 %v1598, %v992
          %v1603 = vadd.f32 %v1599, %v992
          %v1604 = vand.u32 2147483647, %v1600
          %v1605 = vand.u32 2147483647, %v1601
          %v1606 = vand.u32 2147483647, %v1602
          %v1607 = vand.u32 2147483647, %v1603
          %v1608 = vsub.f32 0.0, %v1604
          %v1609 = vsub.f32 0.0, %v1605
          %v1610 = vsub.f32 0.0, %v1606
          %v1611 = vsub.f32 0.0, %v1607
          %v1612 = vmul.f32 %v1608, 1.442695
          %v1613 = vpow.pop %v1612
          %v1614 = vmul.f32 %v1609, 1.442695
          %v1615 = vpow.pop %v1614
          %v1616 = vmul.f32 %v1610, 1.442695
          %v1617 = vpow.pop %v1616
          %v1618 = vmul.f32 %v1611, 1.442695
          %v1619 = vpow.pop %v1618
          %vm1620 = vcmp.ge.f32.partialorder %v1600, 0.0
          %vm1621 = vcmp.ge.f32.partialorder %v1601, 0.0
          %vm1622 = vcmp.ge.f32.partialorder %v1602, 0.0
          %vm1623 = vcmp.ge.f32.partialorder %v1603, 0.0
          %v1624 = vmul.f32 %v1613, 2.0
          %v1625 = vmul.f32 %v1615, 2.0
          %v1626 = vmul.f32 %v1617, 2.0
          %v1627 = vmul.f32 %v1619, 2.0
          %v1628 = vadd.f32 %v1624, 1.0
          %v1629 = vadd.f32 %v1625, 1.0
          %v1630 = vadd.f32 %v1626, 1.0
          %v1631 = vadd.f32 %v1627, 1.0
          %v1632 = vadd.f32 %v1613, 2.0
          %v1633 = vadd.f32 %v1615, 2.0
          %v1634 = vadd.f32 %v1617, 2.0
          %v1635 = vadd.f32 %v1619, 2.0
          %v1636 = vmul.f32 %v1613, %v1632
          %v1637 = vmul.f32 %v1615, %v1633
          %v1638 = vmul.f32 %v1617, %v1634
          %v1639 = vmul.f32 %v1619, %v1635
          %v1640 = vsel %vm1620, %v1628, %v1636
          %v1641 = vsel %vm1621, %v1629, %v1637
          %v1642 = vsel %vm1622, %v1630, %v1638
          %v1643 = vsel %vm1623, %v1631, %v1639
          %v1644 = vmul.f32 %v1624, %v1613
          %v1645 = vmul.f32 %v1625, %v1615
          %v1646 = vmul.f32 %v1626, %v1617
          %v1647 = vmul.f32 %v1627, %v1619
          %v1648 = vsel %vm1620, %v1644, 2.0
          %v1649 = vsel %vm1621, %v1645, 2.0
          %v1650 = vsel %vm1622, %v1646, 2.0
          %v1651 = vsel %vm1623, %v1647, 2.0
          %v1652 = vadd.f32 %v1640, %v1648
          %v1653 = vadd.f32 %v1641, %v1649
          %v1654 = vadd.f32 %v1642, %v1650
          %v1655 = vadd.f32 %v1643, %v1651
          %v1656 = vmul.f32 %v1600, %v1640
          %v1657 = vmul.f32 %v1601, %v1641
          %v1658 = vmul.f32 %v1602, %v1642
          %v1659 = vmul.f32 %v1603, %v1643
          %v1660 = vrcp.pop %v1652
          %v1661 = vrcp.pop %v1653
          %v1662 = vrcp.pop %v1654
          %v1663 = vrcp.pop %v1655
          %v1664 = vmul.f32 %v1656, %v1660
          %v1665 = vmul.f32 %v1657, %v1661
          %v1666 = vmul.f32 %v1658, %v1662
          %v1667 = vmul.f32 %v1659, %v1663
          %v1668 = vpack.c.bf16 %v1665, %v1664
          %v1669 = vpack.c.bf16 %v1667, %v1666
          %v1672 = vunpack.c.l.b16 %v1668
          %v1673 = vunpack.c.h.b16 %v1668
          %v1674 = vunpack.c.l.b16 %v1669
          %v1675 = vunpack.c.h.b16 %v1669
          %v1676 = vpack.c.b16 %v1672, %v1672
          %v1677 = vpack.c.b16 %v1673, %v1673
          %v1678 = vpack.c.b16 %v1674, %v1674
          %v1679 = vpack.c.b16 %v1675, %v1675
          %1684 = vst [vmem:[%s1587] sm:$0xf] %v1676
          %1685 = vst [vmem:[%s1587 + $0x4] sm:$0xf] %v1677
          %1686 = vst [vmem:[%s1587 + $0x8] sm:$0xf] %v1678
          %1687 = vst [vmem:[%s1587 + $0xc] sm:$0xf] %v1679
          %s1688 = scalar_lea.vmem %s267, 112 [#allocation4]
          %v1689 = vld [vmem:[%s1688] sm:$0xf]
          %v1690 = vld [vmem:[%s1688 + $0x4] sm:$0xf]
          %v1691 = vld [vmem:[%s1688 + $0x8] sm:$0xf]
          %v1692 = vld [vmem:[%s1688 + $0xc] sm:$0xf]
          %v1693 = vunpack.c.l.bf16 %v1689
          %v1694 = vunpack.c.l.bf16 %v1690
          %v1695 = vunpack.c.l.bf16 %v1691
          %v1696 = vunpack.c.l.bf16 %v1692
          %v1697 = vmul.f32 %v1693, %v983
          %v1698 = vmul.f32 %v1694, %v983
          %v1699 = vmul.f32 %v1695, %v983
          %v1700 = vmul.f32 %v1696, %v983
          %v1701 = vadd.f32 %v1697, %v992
          %v1702 = vadd.f32 %v1698, %v992
          %v1703 = vadd.f32 %v1699, %v992
          %v1704 = vadd.f32 %v1700, %v992
          %v1705 = vand.u32 2147483647, %v1701
          %v1706 = vand.u32 2147483647, %v1702
          %v1707 = vand.u32 2147483647, %v1703
          %v1708 = vand.u32 2147483647, %v1704
          %v1709 = vsub.f32 0.0, %v1705
          %v1710 = vsub.f32 0.0, %v1706
          %v1711 = vsub.f32 0.0, %v1707
          %v1712 = vsub.f32 0.0, %v1708
          %v1713 = vmul.f32 %v1709, 1.442695
          %v1714 = vpow.pop %v1713
          %v1715 = vmul.f32 %v1710, 1.442695
          %v1716 = vpow.pop %v1715
          %v1717 = vmul.f32 %v1711, 1.442695
          %v1718 = vpow.pop %v1717
          %v1719 = vmul.f32 %v1712, 1.442695
          %v1720 = vpow.pop %v1719
          %vm1721 = vcmp.ge.f32.partialorder %v1701, 0.0
          %vm1722 = vcmp.ge.f32.partialorder %v1702, 0.0
          %vm1723 = vcmp.ge.f32.partialorder %v1703, 0.0
          %vm1724 = vcmp.ge.f32.partialorder %v1704, 0.0
          %v1725 = vmul.f32 %v1714, 2.0
          %v1726 = vmul.f32 %v1716, 2.0
          %v1727 = vmul.f32 %v1718, 2.0
          %v1728 = vmul.f32 %v1720, 2.0
          %v1729 = vadd.f32 %v1725, 1.0
          %v1730 = vadd.f32 %v1726, 1.0
          %v1731 = vadd.f32 %v1727, 1.0
          %v1732 = vadd.f32 %v1728, 1.0
          %v1733 = vadd.f32 %v1714, 2.0
          %v1734 = vadd.f32 %v1716, 2.0
          %v1735 = vadd.f32 %v1718, 2.0
          %v1736 = vadd.f32 %v1720, 2.0
          %v1737 = vmul.f32 %v1714, %v1733
          %v1738 = vmul.f32 %v1716, %v1734
          %v1739 = vmul.f32 %v1718, %v1735
          %v1740 = vmul.f32 %v1720, %v1736
          %v1741 = vsel %vm1721, %v1729, %v1737
          %v1742 = vsel %vm1722, %v1730, %v1738
          %v1743 = vsel %vm1723, %v1731, %v1739
          %v1744 = vsel %vm1724, %v1732, %v1740
          %v1745 = vmul.f32 %v1725, %v1714
          %v1746 = vmul.f32 %v1726, %v1716
          %v1747 = vmul.f32 %v1727, %v1718
          %v1748 = vmul.f32 %v1728, %v1720
          %v1749 = vsel %vm1721, %v1745, 2.0
          %v1750 = vsel %vm1722, %v1746, 2.0
          %v1751 = vsel %vm1723, %v1747, 2.0
          %v1752 = vsel %vm1724, %v1748, 2.0
          %v1753 = vadd.f32 %v1741, %v1749
          %v1754 = vadd.f32 %v1742, %v1750
          %v1755 = vadd.f32 %v1743, %v1751
          %v1756 = vadd.f32 %v1744, %v1752
          %v1757 = vmul.f32 %v1701, %v1741
          %v1758 = vmul.f32 %v1702, %v1742
          %v1759 = vmul.f32 %v1703, %v1743
          %v1760 = vmul.f32 %v1704, %v1744
          %v1761 = vrcp.pop %v1753
          %v1762 = vrcp.pop %v1754
          %v1763 = vrcp.pop %v1755
          %v1764 = vrcp.pop %v1756
          %v1765 = vmul.f32 %v1757, %v1761
          %v1766 = vmul.f32 %v1758, %v1762
          %v1767 = vmul.f32 %v1759, %v1763
          %v1768 = vmul.f32 %v1760, %v1764
          %v1769 = vpack.c.bf16 %v1766, %v1765
          %v1770 = vpack.c.bf16 %v1768, %v1767
          %v1773 = vunpack.c.l.b16 %v1769
          %v1774 = vunpack.c.h.b16 %v1769
          %v1775 = vunpack.c.l.b16 %v1770
          %v1776 = vunpack.c.h.b16 %v1770
          %v1777 = vpack.c.b16 %v1773, %v1773
          %v1778 = vpack.c.b16 %v1774, %v1774
          %v1779 = vpack.c.b16 %v1775, %v1775
          %v1780 = vpack.c.b16 %v1776, %v1776
          %1785 = vst [vmem:[%s1688] sm:$0xf] %v1777
          %1786 = vst [vmem:[%s1688 + $0x4] sm:$0xf] %v1778
          %1787 = vst [vmem:[%s1688 + $0x8] sm:$0xf] %v1779
          %1788 = vst [vmem:[%s1688 + $0xc] sm:$0xf] %v1780
        $region52: #{tpu_custom_call.1} parent=43 // pred_fallthru
          _
        %s1789 = sand.u32 %s173, 1
        %s1790 = scalar_lea.sflag [#allocation5], %s1789
        %s1791 = sand.u32 %s173, 1
        %s1792 = smul.addr %s1791, 128
        %s1793 = scalar_lea.vmem [#allocation4], %s1792
        // Predicated region
        $region53: #{tpu_custom_call.1} parent=43 // pred_check
          %p1794 = pneg %p183
        $region54: #{tpu_custom_call.1} parent=43 // pred_check_branch
          %1796 = sbr.rel (%p1794) target = $region56
        $region55: #{tpu_custom_call.1} parent=43 // pred_region
          %s1798 = ssub.s32 2048, 2048
          %1799 = vsyncadd %s1790, %s1798
          %s1800 = smul.addr %s24, 32
          %s1801 = smul.addr %s1800, 64
          %s1802 = scalar_lea.hbm %s6, %s1801
          %s1803 = sshll.u32 %s1793, 4
          %s1804 = int_to_ptr.vmem [resolvable:$true] %s1803
          %1809 = dma.vmem_to_hbm [thread:$0]  %s1804, 2048, %s1802, %s1790, 64, 64, 4
        $region56: #{tpu_custom_call.1} parent=43 // pred_fallthru
          _
      $region44: #{tpu_custom_call.1} parent=5 // pred_fallthru
        _
      %p1810 = scmp.le.s32.totalorder 2, %s15
      // Predicated region
      $region57: #{tpu_custom_call.1} parent=5 // pred_check
        %p1811 = pneg %p1810
      $region58: #{tpu_custom_call.1} parent=5 // pred_check_branch
        %1813 = sbr.rel (%p1811) target = $region60
      $region59: #{tpu_custom_call.1} parent=5 // pred_region
        %s1814 = ssub.s32 %s15, 2
        // Predicated region
        $region61: #{tpu_custom_call.1} parent=59 // pred_check
          %p1815 = pneg %p189
        $region62: #{tpu_custom_call.1} parent=59 // pred_check_branch
          %1817 = sbr.rel (%p1815) target = $region64
        $region63: #{tpu_custom_call.1} parent=59 // pred_region
          %s1818 = sand.u32 %s174, 1
          %s1819 = scalar_lea.sflag [#allocation5], %s1818
          %s1820 = sand.u32 %s174, 1
          %s1821 = smul.addr %s1820, 128
          %s1822 = scalar_lea.vmem [#allocation4], %s1821
          %1823 = dma.done %s1819, 2048
        $region64: #{tpu_custom_call.1} parent=59 // pred_fallthru
          _
      $region60: #{tpu_custom_call.1} parent=5 // pred_fallthru
        _
    $region6: #{tpu_custom_call.1} parent=1 // loop_footer
      %s19 = sadd.s32 1, %s15
    $region7: #{tpu_custom_call.1} parent=1 // loop_footer_branch
      %14 = sbr.rel target = $region3
    $region8: #{tpu_custom_call.1} parent=1 // loop_exit
      _
    %1824 = vsyncpa [#allocation5], 1
    %s1825 = scalar_lea.sflag [#allocation5], 1
    %1826 = vsyncpa %s1825, 1

</llo_original>
